<compile_context>
chip_gen: v7x
topology: tpu7x:2x2x1
jax: 0.10.0
libtpu: 0.0.40
codegen_flags: <defaults>
</compile_context>

<pallas_src>
import jax
import jax.numpy as jnp
from jax import lax
from jax.experimental import pallas as pl
from jax.experimental.pallas import tpu as pltpu


def _lstm_chunk_kernel(x_ref, wih_ref, whh_ref, b_ref, len_ref,
                       out_ref, hn_ref, cn_ref,
                       xp_scr, hs_scr, h_scr, c_scr):
    """One (batch-tile, time-chunk) grid step of a single-layer LSTM.

    x_ref   : [TB, T, E]   input chunk (batch-major, as given by the user)
    wih_ref : [E, 4H]      fused input->gate weights (gate order i, f, g, o)
    whh_ref : [H, 4H]      fused hidden->gate weights
    b_ref   : [1, 4H]      b_ih + b_hh
    len_ref : [TB, 1]      int32 sequence lengths
    out_ref : [TB, T, H]   per-step hidden states (zeroed past each length)
    hn_ref  : [TB, H]      hidden state at t == length-1 (resident across time)
    cn_ref  : [TB, H]      cell state at t == length-1
    xp_scr  : [T, TB, 4H]  f32 chunk input projection
    hs_scr  : [T, TB, H]   f32 per-step hidden states (time-major)
    h_scr   : [TB, H]      f32 recurrent h carried across time chunks
    c_scr   : [TB, H]      f32 recurrent c carried across time chunks
    """
    t_chunk = pl.program_id(1)
    TB, T, E = x_ref.shape
    H4 = whh_ref.shape[1]
    H = H4 // 4

    @pl.when(t_chunk == 0)
    def _():
        h_scr[...] = jnp.zeros_like(h_scr)
        c_scr[...] = jnp.zeros_like(c_scr)
        hn_ref[...] = jnp.zeros_like(hn_ref)
        cn_ref[...] = jnp.zeros_like(cn_ref)

    # ---- Input projection for the whole chunk: one big, lane-dense MXU pass.
    x_tm = jnp.transpose(x_ref[...], (1, 0, 2)).reshape(T * TB, E)   # [T*TB, E]
    xproj = (jnp.dot(x_tm, wih_ref[...], preferred_element_type=jnp.float32)
             + b_ref[...])                                            # [T*TB, 4H]
    xp_scr[...] = xproj.reshape(T, TB, H4)

    # ---- Hoist loop invariants (weights, lengths, chunk offset) out of the loop.
    whh = whh_ref[...]
    lens = len_ref[...]                       # [TB, 1] int32
    t0 = t_chunk * T

    def step(t, carry):
        h, c, hn, cn = carry
        gates = xp_scr[t] + jnp.dot(h.astype(whh.dtype), whh,
                                    preferred_element_type=jnp.float32)
        i_g = jax.nn.sigmoid(gates[:, 0 * H:1 * H])
        f_g = jax.nn.sigmoid(gates[:, 1 * H:2 * H])
        g_g = jnp.tanh(gates[:, 2 * H:3 * H])
        o_g = jax.nn.sigmoid(gates[:, 3 * H:4 * H])
        c_new = f_g * c + i_g * g_g
        h_new = o_g * jnp.tanh(c_new)
        hs_scr[t] = h_new
        # 'packed sequence' final state: capture at t == length - 1.
        is_last = (lens - 1) == (t0 + t)      # [TB, 1]
        hn = jnp.where(is_last, h_new, hn)
        cn = jnp.where(is_last, c_new, cn)
        return h_new, c_new, hn, cn

    carry0 = (h_scr[...], c_scr[...], hn_ref[...], cn_ref[...])
    h, c, hn, cn = lax.fori_loop(0, T, step, carry0, unroll=True)

    # ---- Single writeback per chunk (no per-step masked stores).
    h_scr[...] = h
    c_scr[...] = c
    hn_ref[...] = hn.astype(hn_ref.dtype)
    cn_ref[...] = cn.astype(cn_ref.dtype)

    # Zero the outputs past each row's length (pad_packed_sequence semantics),
    # then store the whole chunk block at once.
    t_idx = t0 + lax.broadcasted_iota(jnp.int32, (T, TB, 1), 0)
    valid = t_idx < lens[None, :, :]
    hs = jnp.where(valid, hs_scr[...], 0.0)
    out_ref[...] = jnp.transpose(hs, (1, 0, 2)).astype(out_ref.dtype)


def rnn_encoder_lstm(data, padding_mask, W_ih, W_hh, b_ih, b_hh,
                     *, time_chunk=8, mxu_dtype=jnp.float32):
    """Single-layer unidirectional LSTM RNNEncoder forward.

    data         : [B, S, E] float, padding_mask: [B, S] contiguous-prefix {0,1}
    W_ih / W_hh  : [4H, E] / [4H, H] torch.nn.LSTM weights (gate order i,f,g,o)
    b_ih / b_hh  : [4H]
    Returns (output [B, S, H], (h_n [1, B, H], c_n [1, B, H])).

    Notes:
      * lengths must be >= 1 (torch's pack_padded_sequence has the same limit);
        length-0 rows get zero output / zero state here.
      * padding_mask must be a contiguous prefix (packed-sequence semantics).
      * mxu_dtype=jnp.bfloat16 halves MXU/VMEM cost on v6e/v7x; the elementwise
        and transcendental path stays f32 (required on v5e).
    """
    B, S, E = data.shape
    H = W_hh.shape[1]

    # Block-shape constraint: time tile must be a multiple of 8 or the full S.
    if S % time_chunk != 0 or (time_chunk % 8 != 0 and time_chunk != S):
        time_chunk = S
    n_t = S // time_chunk

    # Batch tile: full batch here.  For large B, pad B to a multiple of 8 and
    # pick TB = B // 2 so the "parallel" axis shards across v7x's two cores.
    TB = B
    n_b = B // TB

    # Glue (plain JAX): parameter packing / dtype only — no heavy compute.
    wih = jnp.transpose(W_ih, (1, 0)).astype(mxu_dtype)            # [E, 4H]
    whh = jnp.transpose(W_hh, (1, 0)).astype(mxu_dtype)            # [H, 4H]
    bias = (b_ih + b_hh).reshape(1, 4 * H).astype(jnp.float32)     # [1, 4H]
    lengths = padding_mask.astype(jnp.int32).sum(axis=1).reshape(B, 1)
    x = data.astype(mxu_dtype)

    grid_spec = pltpu.PrefetchScalarGridSpec(
        num_scalar_prefetch=0,
        grid=(n_b, n_t),
        in_specs=[
            pl.BlockSpec((TB, time_chunk, E), lambda b, t: (b, t, 0)),  # x chunk
            pl.BlockSpec((E, 4 * H), lambda b, t: (0, 0)),              # W_ih
            pl.BlockSpec((H, 4 * H), lambda b, t: (0, 0)),              # W_hh
            pl.BlockSpec((1, 4 * H), lambda b, t: (0, 0)),              # bias
            pl.BlockSpec((TB, 1), lambda b, t: (b, 0)),                 # lengths
        ],
        out_specs=[
            pl.BlockSpec((TB, time_chunk, H), lambda b, t: (b, t, 0)),  # output
            pl.BlockSpec((TB, H), lambda b, t: (b, 0)),                 # h_n
            pl.BlockSpec((TB, H), lambda b, t: (b, 0)),                 # c_n
        ],
        scratch_shapes=[
            pltpu.VMEM((time_chunk, TB, 4 * H), jnp.float32),  # x projection
            pltpu.VMEM((time_chunk, TB, H), jnp.float32),      # chunk hiddens
            pltpu.VMEM((TB, H), jnp.float32),                  # recurrent h
            pltpu.VMEM((TB, H), jnp.float32),                  # recurrent c
        ],
    )

    out, hn, cn = pl.pallas_call(
        _lstm_chunk_kernel,
        out_shape=(
            jax.ShapeDtypeStruct((B, S, H), jnp.float32),
            jax.ShapeDtypeStruct((B, H), jnp.float32),
            jax.ShapeDtypeStruct((B, H), jnp.float32),
        ),
        grid_spec=grid_spec,
        compiler_params=pltpu.CompilerParams(
            dimension_semantics=("parallel", "arbitrary"),
        ),
    )(x, wih, whh, bias, lengths)

    state = (hn.reshape(1, B, H), cn.reshape(1, B, H))
    return out, state


def _reference(data, padding_mask, W_ih, W_hh, b_ih, b_hh):
    """Pure-JAX reference matching torch.nn.LSTM + packed-sequence handling."""
    B, S, E = data.shape
    H = W_hh.shape[1]
    lengths = padding_mask.astype(jnp.int32).sum(axis=1)

    def cell(carry, x_t):
        h, c = carry
        gates = x_t @ W_ih.T + h @ W_hh.T + b_ih + b_hh
        i, f, g, o = jnp.split(gates, 4, axis=-1)
        i, f, o = jax.nn.sigmoid(i), jax.nn.sigmoid(f), jax.nn.sigmoid(o)
        g = jnp.tanh(g)
        c = f * c + i * g
        h = o * jnp.tanh(c)
        return (h, c), (h, c)

    x_sbe = jnp.transpose(data, (1, 0, 2))
    (_, _), (hs, cs) = lax.scan(cell, (jnp.zeros((B, H)), jnp.zeros((B, H))), x_sbe)
    hs = jnp.transpose(hs, (1, 0, 2))                 # [B, S, H]
    cs = jnp.transpose(cs, (1, 0, 2))
    valid = (jnp.arange(S)[None, :] < lengths[:, None])[:, :, None]
    out = jnp.where(valid, hs, 0.0)
    h_n = hs[jnp.arange(B), lengths - 1, :][None]     # [1, B, H]
    c_n = cs[jnp.arange(B), lengths - 1, :][None]
    return out, h_n, c_n


if __name__ == "__main__":
    B, S, E, H = 2, 16, 32, 32

    key = jax.random.PRNGKey(0)
    k_x, k1, k2, k3, k4 = jax.random.split(key, 5)

    data = jax.random.normal(k_x, (B, S, E), dtype=jnp.float32)

    # Contiguous-prefix padding mask (packed-sequence style): lengths = [16, 11]
    lengths = jnp.array([S, 11], dtype=jnp.int32)
    padding_mask = (jnp.arange(S)[None, :] < lengths[:, None]).astype(jnp.float32)

    # torch.nn.LSTM-style deterministic init: U(-1/sqrt(H), 1/sqrt(H)).
    bound = 1.0 / jnp.sqrt(jnp.float32(H))
    W_ih = jax.random.uniform(k1, (4 * H, E), minval=-bound, maxval=bound)
    W_hh = jax.random.uniform(k2, (4 * H, H), minval=-bound, maxval=bound)
    b_ih = jax.random.uniform(k3, (4 * H,), minval=-bound, maxval=bound)
    b_hh = jax.random.uniform(k4, (4 * H,), minval=-bound, maxval=bound)

    out, (h_n, c_n) = rnn_encoder_lstm(data, padding_mask, W_ih, W_hh,
                                       b_ih, b_hh, time_chunk=8)
    out = jax.block_until_ready(out)

    ref_out, ref_hn, ref_cn = _reference(data, padding_mask, W_ih, W_hh, b_ih, b_hh)
    assert out.shape == (B, S, H)
    assert h_n.shape == (1, B, H) and c_n.shape == (1, B, H)
    assert jnp.allclose(out, ref_out, rtol=1e-5, atol=1e-5), "output mismatch"
    assert jnp.allclose(h_n, ref_hn, rtol=1e-5, atol=1e-5), "h_n mismatch"
    assert jnp.allclose(c_n, ref_cn, rtol=1e-5, atol=1e-5), "c_n mismatch"

    print("KERNEL_OK")
</pallas_src>

<mosaic_0001>
module attributes {stable_mosaic.version = 11 : i64} {
  func.func @_lstm_chunk_kernel(%arg0: i32, %arg1: i32, %arg2: memref<2x8x32xf32, #tpu.memory_space<vmem>>, %arg3: memref<32x128xf32, #tpu.memory_space<vmem>>, %arg4: memref<32x128xf32, #tpu.memory_space<vmem>>, %arg5: memref<1x128xf32, #tpu.memory_space<vmem>>, %arg6: memref<2x1xi32, #tpu.memory_space<vmem>>, %arg7: memref<2x8x32xf32, #tpu.memory_space<vmem>>, %arg8: memref<2x32xf32, #tpu.memory_space<vmem>>, %arg9: memref<2x32xf32, #tpu.memory_space<vmem>>, %arg10: memref<8x2x128xf32, #tpu.memory_space<vmem>>, %arg11: memref<8x2x32xf32, #tpu.memory_space<vmem>>, %arg12: memref<2x32xf32, #tpu.memory_space<vmem>>, %arg13: memref<2x32xf32, #tpu.memory_space<vmem>>) attributes {dimension_semantics = [#tpu.dimension_semantics<parallel>, #tpu.dimension_semantics<arbitrary>], iteration_bounds = array<i64: 1, 2>, scalar_prefetch = 0 : i64, scratch_operands = 4 : i64, tpu.core_type = #tpu.core_type<tc>, window_params = [{transform_indices = @transform_0, window_bounds = array<i64: 2, 8, 32>}, {pipeline_mode = #tpu.pipeline_mode<synchronous>, transform_indices = @transform_1, window_bounds = array<i64: 32, 128>}, {pipeline_mode = #tpu.pipeline_mode<synchronous>, transform_indices = @transform_2, window_bounds = array<i64: 32, 128>}, {pipeline_mode = #tpu.pipeline_mode<synchronous>, transform_indices = @transform_3, window_bounds = array<i64: 1, 128>}, {transform_indices = @transform_4, window_bounds = array<i64: 2, 1>}, {transform_indices = @transform_5, window_bounds = array<i64: 2, 8, 32>}, {transform_indices = @transform_6, window_bounds = array<i64: 2, 32>}, {transform_indices = @transform_7, window_bounds = array<i64: 2, 32>}]} {
    %c0_i32 = arith.constant 0 : i32
    %0 = arith.cmpi eq, %arg1, %c0_i32 : i32
    %1 = arith.extui %0 : i1 to i32
    %c0_i32_0 = arith.constant 0 : i32
    %2 = arith.cmpi ne, %1, %c0_i32_0 : i32
    scf.if %2 {
      %cst_111 = arith.constant 0.000000e+00 : f32
      %397 = vector.broadcast %cst_111 : f32 to vector<2x32xf32>
      %c0_112 = arith.constant 0 : index
      %c0_113 = arith.constant 0 : index
      %398 = vector.load %arg12[%c0_112, %c0_113] : memref<2x32xf32, #tpu.memory_space<vmem>>, vector<2x32xf32>
      tpu.vector_store %arg12[%c0_112, %c0_113], %397 {strides = array<i32>} : memref<2x32xf32, #tpu.memory_space<vmem>>, vector<2x32xf32>,
      %cst_114 = arith.constant 0.000000e+00 : f32
      %399 = vector.broadcast %cst_114 : f32 to vector<2x32xf32>
      %c0_115 = arith.constant 0 : index
      %c0_116 = arith.constant 0 : index
      %400 = vector.load %arg13[%c0_115, %c0_116] : memref<2x32xf32, #tpu.memory_space<vmem>>, vector<2x32xf32>
      tpu.vector_store %arg13[%c0_115, %c0_116], %399 {strides = array<i32>} : memref<2x32xf32, #tpu.memory_space<vmem>>, vector<2x32xf32>,
      %cst_117 = arith.constant 0.000000e+00 : f32
      %401 = vector.broadcast %cst_117 : f32 to vector<2x32xf32>
      %c0_118 = arith.constant 0 : index
      %c0_119 = arith.constant 0 : index
      %402 = vector.load %arg8[%c0_118, %c0_119] : memref<2x32xf32, #tpu.memory_space<vmem>>, vector<2x32xf32>
      tpu.vector_store %arg8[%c0_118, %c0_119], %401 {strides = array<i32>} : memref<2x32xf32, #tpu.memory_space<vmem>>, vector<2x32xf32>,
      %cst_120 = arith.constant 0.000000e+00 : f32
      %403 = vector.broadcast %cst_120 : f32 to vector<2x32xf32>
      %c0_121 = arith.constant 0 : index
      %c0_122 = arith.constant 0 : index
      %404 = vector.load %arg9[%c0_121, %c0_122] : memref<2x32xf32, #tpu.memory_space<vmem>>, vector<2x32xf32>
      tpu.vector_store %arg9[%c0_121, %c0_122], %403 {strides = array<i32>} : memref<2x32xf32, #tpu.memory_space<vmem>>, vector<2x32xf32>,
    } else {
    }
    %c0 = arith.constant 0 : index
    %c0_1 = arith.constant 0 : index
    %c0_2 = arith.constant 0 : index
    %3 = vector.load %arg2[%c0, %c0_1, %c0_2] : memref<2x8x32xf32, #tpu.memory_space<vmem>>, vector<2x8x32xf32>
    %4 = tpu.transpose %3, [1, 0, 2] : vector<2x8x32xf32> -> vector<8x2x32xf32>
    %5 = vector.shape_cast %4 : vector<8x2x32xf32> to vector<16x32xf32>
    %c0_3 = arith.constant 0 : index
    %c0_4 = arith.constant 0 : index
    %6 = vector.load %arg3[%c0_3, %c0_4] : memref<32x128xf32, #tpu.memory_space<vmem>>, vector<32x128xf32>
    %cst = arith.constant dense<0.000000e+00> : vector<16x128xf32>
    %7 = tpu.matmul %5, %6, %cst {dimension_numbers = #tpu.dot_dimension_numbers<[1], [0], [0], [1], [0, 0, 1, 1], [], []>} : vector<16x32xf32>, vector<32x128xf32>, vector<16x128xf32> -> vector<16x128xf32>
    %c0_5 = arith.constant 0 : index
    %c0_6 = arith.constant 0 : index
    %8 = vector.load %arg5[%c0_5, %c0_6] : memref<1x128xf32, #tpu.memory_space<vmem>>, vector<1x128xf32>
    %9 = vector.broadcast %8 : vector<1x128xf32> to vector<16x128xf32>
    %10 = arith.addf %7, %9 : vector<16x128xf32>
    %11 = vector.shape_cast %10 : vector<16x128xf32> to vector<8x2x128xf32>
    %c0_7 = arith.constant 0 : index
    %c0_8 = arith.constant 0 : index
    %c0_9 = arith.constant 0 : index
    %12 = vector.load %arg10[%c0_7, %c0_8, %c0_9] : memref<8x2x128xf32, #tpu.memory_space<vmem>>, vector<8x2x128xf32>
    tpu.vector_store %arg10[%c0_7, %c0_8, %c0_9], %11 {strides = array<i32>} : memref<8x2x128xf32, #tpu.memory_space<vmem>>, vector<8x2x128xf32>,
    %c0_10 = arith.constant 0 : index
    %c0_11 = arith.constant 0 : index
    %13 = vector.load %arg4[%c0_10, %c0_11] : memref<32x128xf32, #tpu.memory_space<vmem>>, vector<32x128xf32>
    %c0_12 = arith.constant 0 : index
    %c0_13 = arith.constant 0 : index
    %14 = vector.load %arg6[%c0_12, %c0_13] : memref<2x1xi32, #tpu.memory_space<vmem>>, vector<2x1xi32>
    %c8_i32 = arith.constant 8 : i32
    %15 = arith.muli %arg1, %c8_i32 : i32
    %c0_14 = arith.constant 0 : index
    %c0_15 = arith.constant 0 : index
    %16 = vector.load %arg12[%c0_14, %c0_15] : memref<2x32xf32, #tpu.memory_space<vmem>>, vector<2x32xf32>
    %c0_16 = arith.constant 0 : index
    %c0_17 = arith.constant 0 : index
    %17 = vector.load %arg13[%c0_16, %c0_17] : memref<2x32xf32, #tpu.memory_space<vmem>>, vector<2x32xf32>
    %c0_18 = arith.constant 0 : index
    %c0_19 = arith.constant 0 : index
    %18 = vector.load %arg8[%c0_18, %c0_19] : memref<2x32xf32, #tpu.memory_space<vmem>>, vector<2x32xf32>
    %c0_20 = arith.constant 0 : index
    %c0_21 = arith.constant 0 : index
    %19 = vector.load %arg9[%c0_20, %c0_21] : memref<2x32xf32, #tpu.memory_space<vmem>>, vector<2x32xf32>
    %c0_i32_22 = arith.constant 0 : i32
    %20 = arith.index_cast %c0_i32_22 : i32 to index
    %c0_23 = arith.constant 0 : index
    %c0_24 = arith.constant 0 : index
    %21 = vector.load %arg10[%20, %c0_23, %c0_24] : memref<8x2x128xf32, #tpu.memory_space<vmem>>, vector<1x2x128xf32>
    %22 = vector.shape_cast %21 : vector<1x2x128xf32> to vector<2x128xf32>
    %cst_25 = arith.constant dense<0.000000e+00> : vector<2x128xf32>
    %23 = tpu.matmul %16, %13, %cst_25 {dimension_numbers = #tpu.dot_dimension_numbers<[1], [0], [0], [1], [0, 0, 1, 1], [], []>} : vector<2x32xf32>, vector<32x128xf32>, vector<2x128xf32> -> vector<2x128xf32>
    %24 = arith.addf %22, %23 : vector<2x128xf32>
    %25 = vector.extract_strided_slice %24 {offsets = [0, 0], sizes = [2, 32], strides = [1, 1]} : vector<2x128xf32> to vector<2x32xf32>
    %26 = arith.negf %25 : vector<2x32xf32>
    %27 = math.exp %26 : vector<2x32xf32>
    %cst_26 = arith.constant 1.000000e+00 : f32
    %28 = vector.broadcast %cst_26 : f32 to vector<2x32xf32>
    %29 = arith.addf %28, %27 : vector<2x32xf32>
    %30 = arith.divf %28, %29 : vector<2x32xf32>
    %31 = vector.extract_strided_slice %24 {offsets = [0, 32], sizes = [2, 32], strides = [1, 1]} : vector<2x128xf32> to vector<2x32xf32>
    %32 = arith.negf %31 : vector<2x32xf32>
    %33 = math.exp %32 : vector<2x32xf32>
    %cst_27 = arith.constant 1.000000e+00 : f32
    %34 = vector.broadcast %cst_27 : f32 to vector<2x32xf32>
    %35 = arith.addf %34, %33 : vector<2x32xf32>
    %36 = arith.divf %34, %35 : vector<2x32xf32>
    %37 = vector.extract_strided_slice %24 {offsets = [0, 64], sizes = [2, 32], strides = [1, 1]} : vector<2x128xf32> to vector<2x32xf32>
    %38 = math.tanh %37 : vector<2x32xf32>
    %39 = vector.extract_strided_slice %24 {offsets = [0, 96], sizes = [2, 32], strides = [1, 1]} : vector<2x128xf32> to vector<2x32xf32>
    %40 = arith.negf %39 : vector<2x32xf32>
    %41 = math.exp %40 : vector<2x32xf32>
    %cst_28 = arith.constant 1.000000e+00 : f32
    %42 = vector.broadcast %cst_28 : f32 to vector<2x32xf32>
    %43 = arith.addf %42, %41 : vector<2x32xf32>
    %44 = arith.divf %42, %43 : vector<2x32xf32>
    %45 = arith.mulf %36, %17 : vector<2x32xf32>
    %46 = arith.mulf %30, %38 : vector<2x32xf32>
    %47 = arith.addf %45, %46 : vector<2x32xf32>
    %48 = math.tanh %47 : vector<2x32xf32>
    %49 = arith.mulf %44, %48 : vector<2x32xf32>
    %50 = arith.index_cast %c0_i32_22 : i32 to index
    %c0_29 = arith.constant 0 : index
    %c0_30 = arith.constant 0 : index
    %51 = vector.load %arg11[%50, %c0_29, %c0_30] : memref<8x2x32xf32, #tpu.memory_space<vmem>>, vector<1x2x32xf32>
    %52 = vector.shape_cast %51 : vector<1x2x32xf32> to vector<2x32xf32>
    %53 = vector.shape_cast %49 : vector<2x32xf32> to vector<1x2x32xf32>
    tpu.vector_store %arg11[%50, %c0_29, %c0_30], %53 {strides = array<i32>} : memref<8x2x32xf32, #tpu.memory_space<vmem>>, vector<1x2x32xf32>,
    %c1_i32 = arith.constant 1 : i32
    %54 = vector.broadcast %c1_i32 : i32 to vector<2x1xi32>
    %55 = arith.subi %14, %54 : vector<2x1xi32>
    %56 = arith.addi %15, %c0_i32_22 : i32
    %57 = vector.broadcast %56 : i32 to vector<2x1xi32>
    %58 = arith.cmpi eq, %55, %57 : vector<2x1xi32>
    %59 = vector.shape_cast %58 : vector<2x1xi1> to vector<2x1xi1>
    %60 = vector.broadcast %59 : vector<2x1xi1> to vector<2x32xi1>
    %61 = arith.select %60, %49, %18 : vector<2x32xi1>, vector<2x32xf32>
    %62 = vector.shape_cast %58 : vector<2x1xi1> to vector<2x1xi1>
    %63 = vector.broadcast %62 : vector<2x1xi1> to vector<2x32xi1>
    %64 = arith.select %63, %47, %19 : vector<2x32xi1>, vector<2x32xf32>
    %c1_i32_31 = arith.constant 1 : i32
    %65 = arith.index_cast %c1_i32_31 : i32 to index
    %c0_32 = arith.constant 0 : index
    %c0_33 = arith.constant 0 : index
    %66 = vector.load %arg10[%65, %c0_32, %c0_33] : memref<8x2x128xf32, #tpu.memory_space<vmem>>, vector<1x2x128xf32>
    %67 = vector.shape_cast %66 : vector<1x2x128xf32> to vector<2x128xf32>
    %cst_34 = arith.constant dense<0.000000e+00> : vector<2x128xf32>
    %68 = tpu.matmul %49, %13, %cst_34 {dimension_numbers = #tpu.dot_dimension_numbers<[1], [0], [0], [1], [0, 0, 1, 1], [], []>} : vector<2x32xf32>, vector<32x128xf32>, vector<2x128xf32> -> vector<2x128xf32>
    %69 = arith.addf %67, %68 : vector<2x128xf32>
    %70 = vector.extract_strided_slice %69 {offsets = [0, 0], sizes = [2, 32], strides = [1, 1]} : vector<2x128xf32> to vector<2x32xf32>
    %71 = arith.negf %70 : vector<2x32xf32>
    %72 = math.exp %71 : vector<2x32xf32>
    %cst_35 = arith.constant 1.000000e+00 : f32
    %73 = vector.broadcast %cst_35 : f32 to vector<2x32xf32>
    %74 = arith.addf %73, %72 : vector<2x32xf32>
    %75 = arith.divf %73, %74 : vector<2x32xf32>
    %76 = vector.extract_strided_slice %69 {offsets = [0, 32], sizes = [2, 32], strides = [1, 1]} : vector<2x128xf32> to vector<2x32xf32>
    %77 = arith.negf %76 : vector<2x32xf32>
    %78 = math.exp %77 : vector<2x32xf32>
    %cst_36 = arith.constant 1.000000e+00 : f32
    %79 = vector.broadcast %cst_36 : f32 to vector<2x32xf32>
    %80 = arith.addf %79, %78 : vector<2x32xf32>
    %81 = arith.divf %79, %80 : vector<2x32xf32>
    %82 = vector.extract_strided_slice %69 {offsets = [0, 64], sizes = [2, 32], strides = [1, 1]} : vector<2x128xf32> to vector<2x32xf32>
    %83 = math.tanh %82 : vector<2x32xf32>
    %84 = vector.extract_strided_slice %69 {offsets = [0, 96], sizes = [2, 32], strides = [1, 1]} : vector<2x128xf32> to vector<2x32xf32>
    %85 = arith.negf %84 : vector<2x32xf32>
    %86 = math.exp %85 : vector<2x32xf32>
    %cst_37 = arith.constant 1.000000e+00 : f32
    %87 = vector.broadcast %cst_37 : f32 to vector<2x32xf32>
    %88 = arith.addf %87, %86 : vector<2x32xf32>
    %89 = arith.divf %87, %88 : vector<2x32xf32>
    %90 = arith.mulf %81, %47 : vector<2x32xf32>
    %91 = arith.mulf %75, %83 : vector<2x32xf32>
    %92 = arith.addf %90, %91 : vector<2x32xf32>
    %93 = math.tanh %92 : vector<2x32xf32>
    %94 = arith.mulf %89, %93 : vector<2x32xf32>
    %95 = arith.index_cast %c1_i32_31 : i32 to index
    %c0_38 = arith.constant 0 : index
    %c0_39 = arith.constant 0 : index
    %96 = vector.load %arg11[%95, %c0_38, %c0_39] : memref<8x2x32xf32, #tpu.memory_space<vmem>>, vector<1x2x32xf32>
    %97 = vector.shape_cast %96 : vector<1x2x32xf32> to vector<2x32xf32>
    %98 = vector.shape_cast %94 : vector<2x32xf32> to vector<1x2x32xf32>
    tpu.vector_store %arg11[%95, %c0_38, %c0_39], %98 {strides = array<i32>} : memref<8x2x32xf32, #tpu.memory_space<vmem>>, vector<1x2x32xf32>,
    %c1_i32_40 = arith.constant 1 : i32
    %99 = vector.broadcast %c1_i32_40 : i32 to vector<2x1xi32>
    %100 = arith.subi %14, %99 : vector<2x1xi32>
    %101 = arith.addi %15, %c1_i32_31 : i32
    %102 = vector.broadcast %101 : i32 to vector<2x1xi32>
    %103 = arith.cmpi eq, %100, %102 : vector<2x1xi32>
    %104 = vector.shape_cast %103 : vector<2x1xi1> to vector<2x1xi1>
    %105 = vector.broadcast %104 : vector<2x1xi1> to vector<2x32xi1>
    %106 = arith.select %105, %94, %61 : vector<2x32xi1>, vector<2x32xf32>
    %107 = vector.shape_cast %103 : vector<2x1xi1> to vector<2x1xi1>
    %108 = vector.broadcast %107 : vector<2x1xi1> to vector<2x32xi1>
    %109 = arith.select %108, %92, %64 : vector<2x32xi1>, vector<2x32xf32>
    %c2_i32 = arith.constant 2 : i32
    %110 = arith.index_cast %c2_i32 : i32 to index
    %c0_41 = arith.constant 0 : index
    %c0_42 = arith.constant 0 : index
    %111 = vector.load %arg10[%110, %c0_41, %c0_42] : memref<8x2x128xf32, #tpu.memory_space<vmem>>, vector<1x2x128xf32>
    %112 = vector.shape_cast %111 : vector<1x2x128xf32> to vector<2x128xf32>
    %cst_43 = arith.constant dense<0.000000e+00> : vector<2x128xf32>
    %113 = tpu.matmul %94, %13, %cst_43 {dimension_numbers = #tpu.dot_dimension_numbers<[1], [0], [0], [1], [0, 0, 1, 1], [], []>} : vector<2x32xf32>, vector<32x128xf32>, vector<2x128xf32> -> vector<2x128xf32>
    %114 = arith.addf %112, %113 : vector<2x128xf32>
    %115 = vector.extract_strided_slice %114 {offsets = [0, 0], sizes = [2, 32], strides = [1, 1]} : vector<2x128xf32> to vector<2x32xf32>
    %116 = arith.negf %115 : vector<2x32xf32>
    %117 = math.exp %116 : vector<2x32xf32>
    %cst_44 = arith.constant 1.000000e+00 : f32
    %118 = vector.broadcast %cst_44 : f32 to vector<2x32xf32>
    %119 = arith.addf %118, %117 : vector<2x32xf32>
    %120 = arith.divf %118, %119 : vector<2x32xf32>
    %121 = vector.extract_strided_slice %114 {offsets = [0, 32], sizes = [2, 32], strides = [1, 1]} : vector<2x128xf32> to vector<2x32xf32>
    %122 = arith.negf %121 : vector<2x32xf32>
    %123 = math.exp %122 : vector<2x32xf32>
    %cst_45 = arith.constant 1.000000e+00 : f32
    %124 = vector.broadcast %cst_45 : f32 to vector<2x32xf32>
    %125 = arith.addf %124, %123 : vector<2x32xf32>
    %126 = arith.divf %124, %125 : vector<2x32xf32>
    %127 = vector.extract_strided_slice %114 {offsets = [0, 64], sizes = [2, 32], strides = [1, 1]} : vector<2x128xf32> to vector<2x32xf32>
    %128 = math.tanh %127 : vector<2x32xf32>
    %129 = vector.extract_strided_slice %114 {offsets = [0, 96], sizes = [2, 32], strides = [1, 1]} : vector<2x128xf32> to vector<2x32xf32>
    %130 = arith.negf %129 : vector<2x32xf32>
    %131 = math.exp %130 : vector<2x32xf32>
    %cst_46 = arith.constant 1.000000e+00 : f32
    %132 = vector.broadcast %cst_46 : f32 to vector<2x32xf32>
    %133 = arith.addf %132, %131 : vector<2x32xf32>
    %134 = arith.divf %132, %133 : vector<2x32xf32>
    %135 = arith.mulf %126, %92 : vector<2x32xf32>
    %136 = arith.mulf %120, %128 : vector<2x32xf32>
    %137 = arith.addf %135, %136 : vector<2x32xf32>
    %138 = math.tanh %137 : vector<2x32xf32>
    %139 = arith.mulf %134, %138 : vector<2x32xf32>
    %140 = arith.index_cast %c2_i32 : i32 to index
    %c0_47 = arith.constant 0 : index
    %c0_48 = arith.constant 0 : index
    %141 = vector.load %arg11[%140, %c0_47, %c0_48] : memref<8x2x32xf32, #tpu.memory_space<vmem>>, vector<1x2x32xf32>
    %142 = vector.shape_cast %141 : vector<1x2x32xf32> to vector<2x32xf32>
    %143 = vector.shape_cast %139 : vector<2x32xf32> to vector<1x2x32xf32>
    tpu.vector_store %arg11[%140, %c0_47, %c0_48], %143 {strides = array<i32>} : memref<8x2x32xf32, #tpu.memory_space<vmem>>, vector<1x2x32xf32>,
    %c1_i32_49 = arith.constant 1 : i32
    %144 = vector.broadcast %c1_i32_49 : i32 to vector<2x1xi32>
    %145 = arith.subi %14, %144 : vector<2x1xi32>
    %146 = arith.addi %15, %c2_i32 : i32
    %147 = vector.broadcast %146 : i32 to vector<2x1xi32>
    %148 = arith.cmpi eq, %145, %147 : vector<2x1xi32>
    %149 = vector.shape_cast %148 : vector<2x1xi1> to vector<2x1xi1>
    %150 = vector.broadcast %149 : vector<2x1xi1> to vector<2x32xi1>
    %151 = arith.select %150, %139, %106 : vector<2x32xi1>, vector<2x32xf32>
    %152 = vector.shape_cast %148 : vector<2x1xi1> to vector<2x1xi1>
    %153 = vector.broadcast %152 : vector<2x1xi1> to vector<2x32xi1>
    %154 = arith.select %153, %137, %109 : vector<2x32xi1>, vector<2x32xf32>
    %c3_i32 = arith.constant 3 : i32
    %155 = arith.index_cast %c3_i32 : i32 to index
    %c0_50 = arith.constant 0 : index
    %c0_51 = arith.constant 0 : index
    %156 = vector.load %arg10[%155, %c0_50, %c0_51] : memref<8x2x128xf32, #tpu.memory_space<vmem>>, vector<1x2x128xf32>
    %157 = vector.shape_cast %156 : vector<1x2x128xf32> to vector<2x128xf32>
    %cst_52 = arith.constant dense<0.000000e+00> : vector<2x128xf32>
    %158 = tpu.matmul %139, %13, %cst_52 {dimension_numbers = #tpu.dot_dimension_numbers<[1], [0], [0], [1], [0, 0, 1, 1], [], []>} : vector<2x32xf32>, vector<32x128xf32>, vector<2x128xf32> -> vector<2x128xf32>
    %159 = arith.addf %157, %158 : vector<2x128xf32>
    %160 = vector.extract_strided_slice %159 {offsets = [0, 0], sizes = [2, 32], strides = [1, 1]} : vector<2x128xf32> to vector<2x32xf32>
    %161 = arith.negf %160 : vector<2x32xf32>
    %162 = math.exp %161 : vector<2x32xf32>
    %cst_53 = arith.constant 1.000000e+00 : f32
    %163 = vector.broadcast %cst_53 : f32 to vector<2x32xf32>
    %164 = arith.addf %163, %162 : vector<2x32xf32>
    %165 = arith.divf %163, %164 : vector<2x32xf32>
    %166 = vector.extract_strided_slice %159 {offsets = [0, 32], sizes = [2, 32], strides = [1, 1]} : vector<2x128xf32> to vector<2x32xf32>
    %167 = arith.negf %166 : vector<2x32xf32>
    %168 = math.exp %167 : vector<2x32xf32>
    %cst_54 = arith.constant 1.000000e+00 : f32
    %169 = vector.broadcast %cst_54 : f32 to vector<2x32xf32>
    %170 = arith.addf %169, %168 : vector<2x32xf32>
    %171 = arith.divf %169, %170 : vector<2x32xf32>
    %172 = vector.extract_strided_slice %159 {offsets = [0, 64], sizes = [2, 32], strides = [1, 1]} : vector<2x128xf32> to vector<2x32xf32>
    %173 = math.tanh %172 : vector<2x32xf32>
    %174 = vector.extract_strided_slice %159 {offsets = [0, 96], sizes = [2, 32], strides = [1, 1]} : vector<2x128xf32> to vector<2x32xf32>
    %175 = arith.negf %174 : vector<2x32xf32>
    %176 = math.exp %175 : vector<2x32xf32>
    %cst_55 = arith.constant 1.000000e+00 : f32
    %177 = vector.broadcast %cst_55 : f32 to vector<2x32xf32>
    %178 = arith.addf %177, %176 : vector<2x32xf32>
    %179 = arith.divf %177, %178 : vector<2x32xf32>
    %180 = arith.mulf %171, %137 : vector<2x32xf32>
    %181 = arith.mulf %165, %173 : vector<2x32xf32>
    %182 = arith.addf %180, %181 : vector<2x32xf32>
    %183 = math.tanh %182 : vector<2x32xf32>
    %184 = arith.mulf %179, %183 : vector<2x32xf32>
    %185 = arith.index_cast %c3_i32 : i32 to index
    %c0_56 = arith.constant 0 : index
    %c0_57 = arith.constant 0 : index
    %186 = vector.load %arg11[%185, %c0_56, %c0_57] : memref<8x2x32xf32, #tpu.memory_space<vmem>>, vector<1x2x32xf32>
    %187 = vector.shape_cast %186 : vector<1x2x32xf32> to vector<2x32xf32>
    %188 = vector.shape_cast %184 : vector<2x32xf32> to vector<1x2x32xf32>
    tpu.vector_store %arg11[%185, %c0_56, %c0_57], %188 {strides = array<i32>} : memref<8x2x32xf32, #tpu.memory_space<vmem>>, vector<1x2x32xf32>,
    %c1_i32_58 = arith.constant 1 : i32
    %189 = vector.broadcast %c1_i32_58 : i32 to vector<2x1xi32>
    %190 = arith.subi %14, %189 : vector<2x1xi32>
    %191 = arith.addi %15, %c3_i32 : i32
    %192 = vector.broadcast %191 : i32 to vector<2x1xi32>
    %193 = arith.cmpi eq, %190, %192 : vector<2x1xi32>
    %194 = vector.shape_cast %193 : vector<2x1xi1> to vector<2x1xi1>
    %195 = vector.broadcast %194 : vector<2x1xi1> to vector<2x32xi1>
    %196 = arith.select %195, %184, %151 : vector<2x32xi1>, vector<2x32xf32>
    %197 = vector.shape_cast %193 : vector<2x1xi1> to vector<2x1xi1>
    %198 = vector.broadcast %197 : vector<2x1xi1> to vector<2x32xi1>
    %199 = arith.select %198, %182, %154 : vector<2x32xi1>, vector<2x32xf32>
    %c4_i32 = arith.constant 4 : i32
    %200 = arith.index_cast %c4_i32 : i32 to index
    %c0_59 = arith.constant 0 : index
    %c0_60 = arith.constant 0 : index
    %201 = vector.load %arg10[%200, %c0_59, %c0_60] : memref<8x2x128xf32, #tpu.memory_space<vmem>>, vector<1x2x128xf32>
    %202 = vector.shape_cast %201 : vector<1x2x128xf32> to vector<2x128xf32>
    %cst_61 = arith.constant dense<0.000000e+00> : vector<2x128xf32>
    %203 = tpu.matmul %184, %13, %cst_61 {dimension_numbers = #tpu.dot_dimension_numbers<[1], [0], [0], [1], [0, 0, 1, 1], [], []>} : vector<2x32xf32>, vector<32x128xf32>, vector<2x128xf32> -> vector<2x128xf32>
    %204 = arith.addf %202, %203 : vector<2x128xf32>
    %205 = vector.extract_strided_slice %204 {offsets = [0, 0], sizes = [2, 32], strides = [1, 1]} : vector<2x128xf32> to vector<2x32xf32>
    %206 = arith.negf %205 : vector<2x32xf32>
    %207 = math.exp %206 : vector<2x32xf32>
    %cst_62 = arith.constant 1.000000e+00 : f32
    %208 = vector.broadcast %cst_62 : f32 to vector<2x32xf32>
    %209 = arith.addf %208, %207 : vector<2x32xf32>
    %210 = arith.divf %208, %209 : vector<2x32xf32>
    %211 = vector.extract_strided_slice %204 {offsets = [0, 32], sizes = [2, 32], strides = [1, 1]} : vector<2x128xf32> to vector<2x32xf32>
    %212 = arith.negf %211 : vector<2x32xf32>
    %213 = math.exp %212 : vector<2x32xf32>
    %cst_63 = arith.constant 1.000000e+00 : f32
    %214 = vector.broadcast %cst_63 : f32 to vector<2x32xf32>
    %215 = arith.addf %214, %213 : vector<2x32xf32>
    %216 = arith.divf %214, %215 : vector<2x32xf32>
    %217 = vector.extract_strided_slice %204 {offsets = [0, 64], sizes = [2, 32], strides = [1, 1]} : vector<2x128xf32> to vector<2x32xf32>
    %218 = math.tanh %217 : vector<2x32xf32>
    %219 = vector.extract_strided_slice %204 {offsets = [0, 96], sizes = [2, 32], strides = [1, 1]} : vector<2x128xf32> to vector<2x32xf32>
    %220 = arith.negf %219 : vector<2x32xf32>
    %221 = math.exp %220 : vector<2x32xf32>
    %cst_64 = arith.constant 1.000000e+00 : f32
    %222 = vector.broadcast %cst_64 : f32 to vector<2x32xf32>
    %223 = arith.addf %222, %221 : vector<2x32xf32>
    %224 = arith.divf %222, %223 : vector<2x32xf32>
    %225 = arith.mulf %216, %182 : vector<2x32xf32>
    %226 = arith.mulf %210, %218 : vector<2x32xf32>
    %227 = arith.addf %225, %226 : vector<2x32xf32>
    %228 = math.tanh %227 : vector<2x32xf32>
    %229 = arith.mulf %224, %228 : vector<2x32xf32>
    %230 = arith.index_cast %c4_i32 : i32 to index
    %c0_65 = arith.constant 0 : index
    %c0_66 = arith.constant 0 : index
    %231 = vector.load %arg11[%230, %c0_65, %c0_66] : memref<8x2x32xf32, #tpu.memory_space<vmem>>, vector<1x2x32xf32>
    %232 = vector.shape_cast %231 : vector<1x2x32xf32> to vector<2x32xf32>
    %233 = vector.shape_cast %229 : vector<2x32xf32> to vector<1x2x32xf32>
    tpu.vector_store %arg11[%230, %c0_65, %c0_66], %233 {strides = array<i32>} : memref<8x2x32xf32, #tpu.memory_space<vmem>>, vector<1x2x32xf32>,
    %c1_i32_67 = arith.constant 1 : i32
    %234 = vector.broadcast %c1_i32_67 : i32 to vector<2x1xi32>
    %235 = arith.subi %14, %234 : vector<2x1xi32>
    %236 = arith.addi %15, %c4_i32 : i32
    %237 = vector.broadcast %236 : i32 to vector<2x1xi32>
    %238 = arith.cmpi eq, %235, %237 : vector<2x1xi32>
    %239 = vector.shape_cast %238 : vector<2x1xi1> to vector<2x1xi1>
    %240 = vector.broadcast %239 : vector<2x1xi1> to vector<2x32xi1>
    %241 = arith.select %240, %229, %196 : vector<2x32xi1>, vector<2x32xf32>
    %242 = vector.shape_cast %238 : vector<2x1xi1> to vector<2x1xi1>
    %243 = vector.broadcast %242 : vector<2x1xi1> to vector<2x32xi1>
    %244 = arith.select %243, %227, %199 : vector<2x32xi1>, vector<2x32xf32>
    %c5_i32 = arith.constant 5 : i32
    %245 = arith.index_cast %c5_i32 : i32 to index
    %c0_68 = arith.constant 0 : index
    %c0_69 = arith.constant 0 : index
    %246 = vector.load %arg10[%245, %c0_68, %c0_69] : memref<8x2x128xf32, #tpu.memory_space<vmem>>, vector<1x2x128xf32>
    %247 = vector.shape_cast %246 : vector<1x2x128xf32> to vector<2x128xf32>
    %cst_70 = arith.constant dense<0.000000e+00> : vector<2x128xf32>
    %248 = tpu.matmul %229, %13, %cst_70 {dimension_numbers = #tpu.dot_dimension_numbers<[1], [0], [0], [1], [0, 0, 1, 1], [], []>} : vector<2x32xf32>, vector<32x128xf32>, vector<2x128xf32> -> vector<2x128xf32>
    %249 = arith.addf %247, %248 : vector<2x128xf32>
    %250 = vector.extract_strided_slice %249 {offsets = [0, 0], sizes = [2, 32], strides = [1, 1]} : vector<2x128xf32> to vector<2x32xf32>
    %251 = arith.negf %250 : vector<2x32xf32>
    %252 = math.exp %251 : vector<2x32xf32>
    %cst_71 = arith.constant 1.000000e+00 : f32
    %253 = vector.broadcast %cst_71 : f32 to vector<2x32xf32>
    %254 = arith.addf %253, %252 : vector<2x32xf32>
    %255 = arith.divf %253, %254 : vector<2x32xf32>
    %256 = vector.extract_strided_slice %249 {offsets = [0, 32], sizes = [2, 32], strides = [1, 1]} : vector<2x128xf32> to vector<2x32xf32>
    %257 = arith.negf %256 : vector<2x32xf32>
    %258 = math.exp %257 : vector<2x32xf32>
    %cst_72 = arith.constant 1.000000e+00 : f32
    %259 = vector.broadcast %cst_72 : f32 to vector<2x32xf32>
    %260 = arith.addf %259, %258 : vector<2x32xf32>
    %261 = arith.divf %259, %260 : vector<2x32xf32>
    %262 = vector.extract_strided_slice %249 {offsets = [0, 64], sizes = [2, 32], strides = [1, 1]} : vector<2x128xf32> to vector<2x32xf32>
    %263 = math.tanh %262 : vector<2x32xf32>
    %264 = vector.extract_strided_slice %249 {offsets = [0, 96], sizes = [2, 32], strides = [1, 1]} : vector<2x128xf32> to vector<2x32xf32>
    %265 = arith.negf %264 : vector<2x32xf32>
    %266 = math.exp %265 : vector<2x32xf32>
    %cst_73 = arith.constant 1.000000e+00 : f32
    %267 = vector.broadcast %cst_73 : f32 to vector<2x32xf32>
    %268 = arith.addf %267, %266 : vector<2x32xf32>
    %269 = arith.divf %267, %268 : vector<2x32xf32>
    %270 = arith.mulf %261, %227 : vector<2x32xf32>
    %271 = arith.mulf %255, %263 : vector<2x32xf32>
    %272 = arith.addf %270, %271 : vector<2x32xf32>
    %273 = math.tanh %272 : vector<2x32xf32>
    %274 = arith.mulf %269, %273 : vector<2x32xf32>
    %275 = arith.index_cast %c5_i32 : i32 to index
    %c0_74 = arith.constant 0 : index
    %c0_75 = arith.constant 0 : index
    %276 = vector.load %arg11[%275, %c0_74, %c0_75] : memref<8x2x32xf32, #tpu.memory_space<vmem>>, vector<1x2x32xf32>
    %277 = vector.shape_cast %276 : vector<1x2x32xf32> to vector<2x32xf32>
    %278 = vector.shape_cast %274 : vector<2x32xf32> to vector<1x2x32xf32>
    tpu.vector_store %arg11[%275, %c0_74, %c0_75], %278 {strides = array<i32>} : memref<8x2x32xf32, #tpu.memory_space<vmem>>, vector<1x2x32xf32>,
    %c1_i32_76 = arith.constant 1 : i32
    %279 = vector.broadcast %c1_i32_76 : i32 to vector<2x1xi32>
    %280 = arith.subi %14, %279 : vector<2x1xi32>
    %281 = arith.addi %15, %c5_i32 : i32
    %282 = vector.broadcast %281 : i32 to vector<2x1xi32>
    %283 = arith.cmpi eq, %280, %282 : vector<2x1xi32>
    %284 = vector.shape_cast %283 : vector<2x1xi1> to vector<2x1xi1>
    %285 = vector.broadcast %284 : vector<2x1xi1> to vector<2x32xi1>
    %286 = arith.select %285, %274, %241 : vector<2x32xi1>, vector<2x32xf32>
    %287 = vector.shape_cast %283 : vector<2x1xi1> to vector<2x1xi1>
    %288 = vector.broadcast %287 : vector<2x1xi1> to vector<2x32xi1>
    %289 = arith.select %288, %272, %244 : vector<2x32xi1>, vector<2x32xf32>
    %c6_i32 = arith.constant 6 : i32
    %290 = arith.index_cast %c6_i32 : i32 to index
    %c0_77 = arith.constant 0 : index
    %c0_78 = arith.constant 0 : index
    %291 = vector.load %arg10[%290, %c0_77, %c0_78] : memref<8x2x128xf32, #tpu.memory_space<vmem>>, vector<1x2x128xf32>
    %292 = vector.shape_cast %291 : vector<1x2x128xf32> to vector<2x128xf32>
    %cst_79 = arith.constant dense<0.000000e+00> : vector<2x128xf32>
    %293 = tpu.matmul %274, %13, %cst_79 {dimension_numbers = #tpu.dot_dimension_numbers<[1], [0], [0], [1], [0, 0, 1, 1], [], []>} : vector<2x32xf32>, vector<32x128xf32>, vector<2x128xf32> -> vector<2x128xf32>
    %294 = arith.addf %292, %293 : vector<2x128xf32>
    %295 = vector.extract_strided_slice %294 {offsets = [0, 0], sizes = [2, 32], strides = [1, 1]} : vector<2x128xf32> to vector<2x32xf32>
    %296 = arith.negf %295 : vector<2x32xf32>
    %297 = math.exp %296 : vector<2x32xf32>
    %cst_80 = arith.constant 1.000000e+00 : f32
    %298 = vector.broadcast %cst_80 : f32 to vector<2x32xf32>
    %299 = arith.addf %298, %297 : vector<2x32xf32>
    %300 = arith.divf %298, %299 : vector<2x32xf32>
    %301 = vector.extract_strided_slice %294 {offsets = [0, 32], sizes = [2, 32], strides = [1, 1]} : vector<2x128xf32> to vector<2x32xf32>
    %302 = arith.negf %301 : vector<2x32xf32>
    %303 = math.exp %302 : vector<2x32xf32>
    %cst_81 = arith.constant 1.000000e+00 : f32
    %304 = vector.broadcast %cst_81 : f32 to vector<2x32xf32>
    %305 = arith.addf %304, %303 : vector<2x32xf32>
    %306 = arith.divf %304, %305 : vector<2x32xf32>
    %307 = vector.extract_strided_slice %294 {offsets = [0, 64], sizes = [2, 32], strides = [1, 1]} : vector<2x128xf32> to vector<2x32xf32>
    %308 = math.tanh %307 : vector<2x32xf32>
    %309 = vector.extract_strided_slice %294 {offsets = [0, 96], sizes = [2, 32], strides = [1, 1]} : vector<2x128xf32> to vector<2x32xf32>
    %310 = arith.negf %309 : vector<2x32xf32>
    %311 = math.exp %310 : vector<2x32xf32>
    %cst_82 = arith.constant 1.000000e+00 : f32
    %312 = vector.broadcast %cst_82 : f32 to vector<2x32xf32>
    %313 = arith.addf %312, %311 : vector<2x32xf32>
    %314 = arith.divf %312, %313 : vector<2x32xf32>
    %315 = arith.mulf %306, %272 : vector<2x32xf32>
    %316 = arith.mulf %300, %308 : vector<2x32xf32>
    %317 = arith.addf %315, %316 : vector<2x32xf32>
    %318 = math.tanh %317 : vector<2x32xf32>
    %319 = arith.mulf %314, %318 : vector<2x32xf32>
    %320 = arith.index_cast %c6_i32 : i32 to index
    %c0_83 = arith.constant 0 : index
    %c0_84 = arith.constant 0 : index
    %321 = vector.load %arg11[%320, %c0_83, %c0_84] : memref<8x2x32xf32, #tpu.memory_space<vmem>>, vector<1x2x32xf32>
    %322 = vector.shape_cast %321 : vector<1x2x32xf32> to vector<2x32xf32>
    %323 = vector.shape_cast %319 : vector<2x32xf32> to vector<1x2x32xf32>
    tpu.vector_store %arg11[%320, %c0_83, %c0_84], %323 {strides = array<i32>} : memref<8x2x32xf32, #tpu.memory_space<vmem>>, vector<1x2x32xf32>,
    %c1_i32_85 = arith.constant 1 : i32
    %324 = vector.broadcast %c1_i32_85 : i32 to vector<2x1xi32>
    %325 = arith.subi %14, %324 : vector<2x1xi32>
    %326 = arith.addi %15, %c6_i32 : i32
    %327 = vector.broadcast %326 : i32 to vector<2x1xi32>
    %328 = arith.cmpi eq, %325, %327 : vector<2x1xi32>
    %329 = vector.shape_cast %328 : vector<2x1xi1> to vector<2x1xi1>
    %330 = vector.broadcast %329 : vector<2x1xi1> to vector<2x32xi1>
    %331 = arith.select %330, %319, %286 : vector<2x32xi1>, vector<2x32xf32>
    %332 = vector.shape_cast %328 : vector<2x1xi1> to vector<2x1xi1>
    %333 = vector.broadcast %332 : vector<2x1xi1> to vector<2x32xi1>
    %334 = arith.select %333, %317, %289 : vector<2x32xi1>, vector<2x32xf32>
    %c7_i32 = arith.constant 7 : i32
    %335 = arith.index_cast %c7_i32 : i32 to index
    %c0_86 = arith.constant 0 : index
    %c0_87 = arith.constant 0 : index
    %336 = vector.load %arg10[%335, %c0_86, %c0_87] : memref<8x2x128xf32, #tpu.memory_space<vmem>>, vector<1x2x128xf32>
    %337 = vector.shape_cast %336 : vector<1x2x128xf32> to vector<2x128xf32>
    %cst_88 = arith.constant dense<0.000000e+00> : vector<2x128xf32>
    %338 = tpu.matmul %319, %13, %cst_88 {dimension_numbers = #tpu.dot_dimension_numbers<[1], [0], [0], [1], [0, 0, 1, 1], [], []>} : vector<2x32xf32>, vector<32x128xf32>, vector<2x128xf32> -> vector<2x128xf32>
    %339 = arith.addf %337, %338 : vector<2x128xf32>
    %340 = vector.extract_strided_slice %339 {offsets = [0, 0], sizes = [2, 32], strides = [1, 1]} : vector<2x128xf32> to vector<2x32xf32>
    %341 = arith.negf %340 : vector<2x32xf32>
    %342 = math.exp %341 : vector<2x32xf32>
    %cst_89 = arith.constant 1.000000e+00 : f32
    %343 = vector.broadcast %cst_89 : f32 to vector<2x32xf32>
    %344 = arith.addf %343, %342 : vector<2x32xf32>
    %345 = arith.divf %343, %344 : vector<2x32xf32>
    %346 = vector.extract_strided_slice %339 {offsets = [0, 32], sizes = [2, 32], strides = [1, 1]} : vector<2x128xf32> to vector<2x32xf32>
    %347 = arith.negf %346 : vector<2x32xf32>
    %348 = math.exp %347 : vector<2x32xf32>
    %cst_90 = arith.constant 1.000000e+00 : f32
    %349 = vector.broadcast %cst_90 : f32 to vector<2x32xf32>
    %350 = arith.addf %349, %348 : vector<2x32xf32>
    %351 = arith.divf %349, %350 : vector<2x32xf32>
    %352 = vector.extract_strided_slice %339 {offsets = [0, 64], sizes = [2, 32], strides = [1, 1]} : vector<2x128xf32> to vector<2x32xf32>
    %353 = math.tanh %352 : vector<2x32xf32>
    %354 = vector.extract_strided_slice %339 {offsets = [0, 96], sizes = [2, 32], strides = [1, 1]} : vector<2x128xf32> to vector<2x32xf32>
    %355 = arith.negf %354 : vector<2x32xf32>
    %356 = math.exp %355 : vector<2x32xf32>
    %cst_91 = arith.constant 1.000000e+00 : f32
    %357 = vector.broadcast %cst_91 : f32 to vector<2x32xf32>
    %358 = arith.addf %357, %356 : vector<2x32xf32>
    %359 = arith.divf %357, %358 : vector<2x32xf32>
    %360 = arith.mulf %351, %317 : vector<2x32xf32>
    %361 = arith.mulf %345, %353 : vector<2x32xf32>
    %362 = arith.addf %360, %361 : vector<2x32xf32>
    %363 = math.tanh %362 : vector<2x32xf32>
    %364 = arith.mulf %359, %363 : vector<2x32xf32>
    %365 = arith.index_cast %c7_i32 : i32 to index
    %c0_92 = arith.constant 0 : index
    %c0_93 = arith.constant 0 : index
    %366 = vector.load %arg11[%365, %c0_92, %c0_93] : memref<8x2x32xf32, #tpu.memory_space<vmem>>, vector<1x2x32xf32>
    %367 = vector.shape_cast %366 : vector<1x2x32xf32> to vector<2x32xf32>
    %368 = vector.shape_cast %364 : vector<2x32xf32> to vector<1x2x32xf32>
    tpu.vector_store %arg11[%365, %c0_92, %c0_93], %368 {strides = array<i32>} : memref<8x2x32xf32, #tpu.memory_space<vmem>>, vector<1x2x32xf32>,
    %c1_i32_94 = arith.constant 1 : i32
    %369 = vector.broadcast %c1_i32_94 : i32 to vector<2x1xi32>
    %370 = arith.subi %14, %369 : vector<2x1xi32>
    %371 = arith.addi %15, %c7_i32 : i32
    %372 = vector.broadcast %371 : i32 to vector<2x1xi32>
    %373 = arith.cmpi eq, %370, %372 : vector<2x1xi32>
    %374 = vector.shape_cast %373 : vector<2x1xi1> to vector<2x1xi1>
    %375 = vector.broadcast %374 : vector<2x1xi1> to vector<2x32xi1>
    %376 = arith.select %375, %364, %331 : vector<2x32xi1>, vector<2x32xf32>
    %377 = vector.shape_cast %373 : vector<2x1xi1> to vector<2x1xi1>
    %378 = vector.broadcast %377 : vector<2x1xi1> to vector<2x32xi1>
    %379 = arith.select %378, %362, %334 : vector<2x32xi1>, vector<2x32xf32>
    %c8_i32_95 = arith.constant 8 : i32
    %c0_96 = arith.constant 0 : index
    %c0_97 = arith.constant 0 : index
    %380 = vector.load %arg12[%c0_96, %c0_97] : memref<2x32xf32, #tpu.memory_space<vmem>>, vector<2x32xf32>
    tpu.vector_store %arg12[%c0_96, %c0_97], %364 {strides = array<i32>} : memref<2x32xf32, #tpu.memory_space<vmem>>, vector<2x32xf32>,
    %c0_98 = arith.constant 0 : index
    %c0_99 = arith.constant 0 : index
    %381 = vector.load %arg13[%c0_98, %c0_99] : memref<2x32xf32, #tpu.memory_space<vmem>>, vector<2x32xf32>
    tpu.vector_store %arg13[%c0_98, %c0_99], %362 {strides = array<i32>} : memref<2x32xf32, #tpu.memory_space<vmem>>, vector<2x32xf32>,
    %c0_100 = arith.constant 0 : index
    %c0_101 = arith.constant 0 : index
    %382 = vector.load %arg8[%c0_100, %c0_101] : memref<2x32xf32, #tpu.memory_space<vmem>>, vector<2x32xf32>
    tpu.vector_store %arg8[%c0_100, %c0_101], %376 {strides = array<i32>} : memref<2x32xf32, #tpu.memory_space<vmem>>, vector<2x32xf32>,
    %c0_102 = arith.constant 0 : index
    %c0_103 = arith.constant 0 : index
    %383 = vector.load %arg9[%c0_102, %c0_103] : memref<2x32xf32, #tpu.memory_space<vmem>>, vector<2x32xf32>
    tpu.vector_store %arg9[%c0_102, %c0_103], %379 {strides = array<i32>} : memref<2x32xf32, #tpu.memory_space<vmem>>, vector<2x32xf32>,
    %384 = tpu.iota {dimensions = array<i32: 0>} : vector<8x2x1xi32>
    %385 = vector.broadcast %15 : i32 to vector<8x2x1xi32>
    %386 = arith.addi %385, %384 : vector<8x2x1xi32>
    %387 = vector.shape_cast %14 : vector<2x1xi32> to vector<1x2x1xi32>
    %388 = vector.broadcast %387 : vector<1x2x1xi32> to vector<8x2x1xi32>
    %389 = arith.cmpi slt, %386, %388 : vector<8x2x1xi32>
    %c0_104 = arith.constant 0 : index
    %c0_105 = arith.constant 0 : index
    %c0_106 = arith.constant 0 : index
    %390 = vector.load %arg11[%c0_104, %c0_105, %c0_106] : memref<8x2x32xf32, #tpu.memory_space<vmem>>, vector<8x2x32xf32>
    %cst_107 = arith.constant 0.000000e+00 : f32
    %391 = vector.shape_cast %389 : vector<8x2x1xi1> to vector<8x2x1xi1>
    %392 = vector.broadcast %391 : vector<8x2x1xi1> to vector<8x2x32xi1>
    %393 = vector.broadcast %cst_107 : f32 to vector<8x2x32xf32>
    %394 = arith.select %392, %390, %393 : vector<8x2x32xi1>, vector<8x2x32xf32>
    %395 = tpu.transpose %394, [1, 0, 2] : vector<8x2x32xf32> -> vector<2x8x32xf32>
    %c0_108 = arith.constant 0 : index
    %c0_109 = arith.constant 0 : index
    %c0_110 = arith.constant 0 : index
    %396 = vector.load %arg7[%c0_108, %c0_109, %c0_110] : memref<2x8x32xf32, #tpu.memory_space<vmem>>, vector<2x8x32xf32>
    tpu.vector_store %arg7[%c0_108, %c0_109, %c0_110], %395 {strides = array<i32>} : memref<2x8x32xf32, #tpu.memory_space<vmem>>, vector<2x8x32xf32>,
    return
  }
  func.func @transform_0(%arg0: i32, %arg1: i32) -> (i32, i32, i32) {
    %c0_i32 = arith.constant 0 : i32
    %c0_i32_0 = arith.constant 0 : i32
    return %arg0, %arg1, %c0_i32 : i32, i32, i32
  }
  func.func @transform_1(%arg0: i32, %arg1: i32) -> (i32, i32) {
    %c0_i32 = arith.constant 0 : i32
    %c0_i32_0 = arith.constant 0 : i32
    %c0_i32_1 = arith.constant 0 : i32
    return %c0_i32, %c0_i32_0 : i32, i32
  }
  func.func @transform_2(%arg0: i32, %arg1: i32) -> (i32, i32) {
    %c0_i32 = arith.constant 0 : i32
    %c0_i32_0 = arith.constant 0 : i32
    %c0_i32_1 = arith.constant 0 : i32
    return %c0_i32, %c0_i32_0 : i32, i32
  }
  func.func @transform_3(%arg0: i32, %arg1: i32) -> (i32, i32) {
    %c0_i32 = arith.constant 0 : i32
    %c0_i32_0 = arith.constant 0 : i32
    %c0_i32_1 = arith.constant 0 : i32
    return %c0_i32, %c0_i32_0 : i32, i32
  }
  func.func @transform_4(%arg0: i32, %arg1: i32) -> (i32, i32) {
    %c0_i32 = arith.constant 0 : i32
    %c0_i32_0 = arith.constant 0 : i32
    return %arg0, %c0_i32 : i32, i32
  }
  func.func @transform_5(%arg0: i32, %arg1: i32) -> (i32, i32, i32) {
    %c0_i32 = arith.constant 0 : i32
    %c0_i32_0 = arith.constant 0 : i32
    return %arg0, %arg1, %c0_i32 : i32, i32, i32
  }
  func.func @transform_6(%arg0: i32, %arg1: i32) -> (i32, i32) {
    %c0_i32 = arith.constant 0 : i32
    %c0_i32_0 = arith.constant 0 : i32
    return %arg0, %c0_i32 : i32, i32
  }
  func.func @transform_7(%arg0: i32, %arg1: i32) -> (i32, i32) {
    %c0_i32 = arith.constant 0 : i32
    %c0_i32_0 = arith.constant 0 : i32
    return %arg0, %c0_i32 : i32, i32
  }
}

</mosaic_0001>

<llo_original>
// kernel: tpu_custom_call.1
$region0: #{tpu_custom_call.1}
  #allocation0 [shape = 'u32[]', space=smem, size = 0x4, offset = 0x4, fixed_abs, tag = 'smem constant byte address 0x4 - core index']
  #allocation1 [shape = 'u32[144,128]{1,0:T(1,128)}', space=vmem, size = 0x12000, scoped, tag = 'internal scratch']
  #allocation2 [shape = 'f32[8,2,128]{2,1,0:T(2,128)}', space=vmem, size = 0x2000, scoped, tag = 'scratch operand']
  #allocation3 [shape = 'f32[8,2,32]{2,1,0:T(2,128)}', space=vmem, size = 0x2000, scoped, tag = 'scratch operand']
  #allocation4 [shape = 'f32[2,32]{1,0:T(2,128)}', space=vmem, size = 0x400, scoped, tag = 'scratch operand']
  #allocation5 [shape = 'f32[2,32]{1,0:T(2,128)}', space=vmem, size = 0x400, scoped, tag = 'scratch operand']
  %s0 = inlined_call_operand.hbm [shape: f32[2,16,32], index: 0, kind: input, shape index: {}]
  %s1 = inlined_call_operand.hbm [shape: f32[32,128], index: 1, kind: input, shape index: {}]
  %s2 = inlined_call_operand.hbm [shape: f32[32,128], index: 2, kind: input, shape index: {}]
  %s3 = inlined_call_operand.vmem [shape: f32[1,128], index: 3, kind: input, shape index: {}]
  %s4 = inlined_call_operand.vmem [shape: s32[2,1], index: 4, kind: input, shape index: {}]
  %s5 = inlined_call_operand.hbm [shape: f32[2,16,32], index: 5, kind: output, shape index: {0}]
  %s6 = inlined_call_operand.hbm [shape: f32[2,32], index: 6, kind: output, shape index: {1}]
  %s7 = inlined_call_operand.hbm [shape: f32[2,32], index: 7, kind: output, shape index: {2}]
  %8 = xla_tuple %s5, %s6, %s7
  %s9 = sld [smem:[#allocation0]]
  $region85: #{tpu_custom_call.1} parent=0
    _
  %s11 = ssub.s32 1, %s9
  %s12 = scalar_select 0, %s11, %s9
  $region1: #{tpu_custom_call.1} parent=0
    #allocation6 [shape = 'u8[16384]{0}', space=vmem, size = 0x4000, scoped, tag = 'input window, operand 0']
    #allocation7 [shape = 's32[2]{0}', space=sflag, size = 0x8, scoped, tag = 'scoped memory for tpu_custom_call.1']
    #allocation8 [shape = 's32[2]{0}', space=sflag, size = 0x8, scoped, tag = 'scoped memory for tpu_custom_call.1']
    #allocation9 [shape = 'u8[16384]{0}', space=vmem, size = 0x4000, scoped, tag = 'input window, operand 1, single buffered']
    #allocation10 [shape = 's32[1]{0}', space=sflag, size = 0x4, scoped, tag = 'scoped memory for tpu_custom_call.1']
    #allocation11 [shape = 'u8[16384]{0}', space=vmem, size = 0x4000, scoped, tag = 'input window, operand 2, single buffered']
    #allocation12 [shape = 'u8[16384]{0}', space=vmem, size = 0x4000, scoped, tag = 'output window, operand 0']
    #allocation13 [shape = 'u8[1024]{0}', space=vmem, size = 0x400, scoped, tag = 'output window, operand 1, single buffered']
    #allocation14 [shape = 's32[1]{0}', space=sflag, size = 0x4, scoped, tag = 'scoped memory for tpu_custom_call.1']
    #allocation15 [shape = 'u8[1024]{0}', space=vmem, size = 0x400, scoped, tag = 'output window, operand 2, single buffered']
    %13 = vsyncpa [#allocation7], 0
    %s14 = scalar_lea.sflag [#allocation7], 1
    %15 = vsyncpa %s14, 0
    %16 = vsyncpa [#allocation10], 0
    %17 = vsyncpa [#allocation8], 0
    %s18 = scalar_lea.sflag [#allocation8], 1
    %19 = vsyncpa %s18, 0
    %20 = vsyncpa [#allocation14], 0
    loop: start=0, step=1, limit=4
    $region2: #{tpu_custom_call.1} parent=1 // loop_pre_header
      _
    $region3: #{tpu_custom_call.1} parent=1 // loop_header
      %s22 = sphi 0, %s26
      %p23 = scmp.ge.s32.totalorder %s22, 4
      %s29 = sphi 0, %s41
      %s30 = sphi 0, %s37
      %s31 = sphi 0, %s29
      %s32 = sphi 0, %s30
      %s33 = sphi 0, %s31
      %s34 = sphi 0, %s32
      %s46 = sphi 0, %s48
      %s49 = sphi 0, %s46
      %s50 = sphi 0, %s49
      %s66 = sphi 0, %s50
      %s70 = sphi 0, %s70
      %s72 = sphi 0, %s70
      %s73 = sphi 0, %s72
      %s87 = sphi 0, %s73
      %s91 = sphi 0, %s91
      %s93 = sphi 0, %s91
      %s94 = sphi 0, %s93
      %s108 = sphi 0, %s94
      %s112 = sphi 0, %s112
      %s114 = sphi 0, %s112
      %s115 = sphi 0, %s114
      %s129 = sphi 0, %s115
      %s135 = sphi 0, %s137
      %s138 = sphi 0, %s135
      %s139 = sphi 0, %s138
      %s155 = sphi 0, %s139
      %s163 = sphi 0, %s165
      %s166 = sphi 0, %s163
      %s167 = sphi 0, %s166
      %s183 = sphi 0, %s167
      %s189 = sphi 0, %s191
      %s192 = sphi 0, %s189
      %s193 = sphi 0, %s192
      %s209 = sphi 0, %s193
      %s215 = sphi 0, %s217
      %s218 = sphi 0, %s215
      %s219 = sphi 0, %s218
      %s235 = sphi 0, %s219
    $region4: #{tpu_custom_call.1} parent=1 // loop_header_branch
      %25 = sbr.rel (%p23) target = $region8
    $region5: #{tpu_custom_call.1} parent=1 // loop_body
      %s27 = ssub.s32 %s22, 1
      %s28 = ssub.s32 %s22, 2
      %s35 = sadd.s32 1, %s30
      %p36 = scmp.ge.s32.totalorder %s35, 2
      %s37 = scalar_select %p36, 0, %s35
      %s38 = sadd.s32 1, %s29
      %s39 = scalar_select %p36, %s38, %s29
      %p40 = scmp.ge.s32.totalorder %s39, 1
      %s41 = scalar_select %p40, 0, %s39
      %s42 = ssub.s32 %s29, %s41
      %s43 = ssub.s32 %s30, %s37
      %s44 = sor.u32 %s42, %s43
      %p45 = scmp.eq.s32.totalorder %s44, 0
      %s47 = sadd.s32 %s46, 1
      %s48 = scalar_select %p45, %s46, %s47
      %p51 = pneg %p45
      %p52 = scmp.eq.s32.totalorder %s22, 1
      %p53 = por %p51, %p52
      %p54 = scmp.ne.s32.totalorder %s46, %s49
      %p55 = scmp.eq.s32.totalorder %s22, 0
      %p56 = por %p54, %p55
      %p57 = scmp.ne.s32.totalorder %s46, %s49
      %p58 = scmp.eq.s32.totalorder %s27, 1
      %p59 = por %p57, %p58
      %p60 = scmp.ne.s32.totalorder %s49, %s50
      %p61 = scmp.eq.s32.totalorder %s27, 0
      %p62 = por %p60, %p61
      %p63 = scmp.ne.s32.totalorder %s49, %s50
      %p64 = scmp.eq.s32.totalorder %s28, 1
      %p65 = por %p63, %p64
      %p67 = scmp.ne.s32.totalorder %s50, %s66
      %p68 = scmp.eq.s32.totalorder %s28, 0
      %p69 = por %p67, %p68
      %s71 = sadd.s32 %s70, 1
      %p74 = scmp.eq.s32.totalorder %s22, 1
      %p75 = scmp.ne.s32.totalorder %s70, %s72
      %p76 = scmp.eq.s32.totalorder %s22, 0
      %p77 = por %p75, %p76
      %p78 = scmp.ne.s32.totalorder %s70, %s72
      %p79 = scmp.eq.s32.totalorder %s27, 1
      %p80 = por %p78, %p79
      %p81 = scmp.ne.s32.totalorder %s72, %s73
      %p82 = scmp.eq.s32.totalorder %s27, 0
      %p83 = por %p81, %p82
      %p84 = scmp.ne.s32.totalorder %s72, %s73
      %p85 = scmp.eq.s32.totalorder %s28, 1
      %p86 = por %p84, %p85
      %p88 = scmp.ne.s32.totalorder %s73, %s87
      %p89 = scmp.eq.s32.totalorder %s28, 0
      %p90 = por %p88, %p89
      %s92 = sadd.s32 %s91, 1
      %p95 = scmp.eq.s32.totalorder %s22, 1
      %p96 = scmp.ne.s32.totalorder %s91, %s93
      %p97 = scmp.eq.s32.totalorder %s22, 0
      %p98 = por %p96, %p97
      %p99 = scmp.ne.s32.totalorder %s91, %s93
      %p100 = scmp.eq.s32.totalorder %s27, 1
      %p101 = por %p99, %p100
      %p102 = scmp.ne.s32.totalorder %s93, %s94
      %p103 = scmp.eq.s32.totalorder %s27, 0
      %p104 = por %p102, %p103
      %p105 = scmp.ne.s32.totalorder %s93, %s94
      %p106 = scmp.eq.s32.totalorder %s28, 1
      %p107 = por %p105, %p106
      %p109 = scmp.ne.s32.totalorder %s94, %s108
      %p110 = scmp.eq.s32.totalorder %s28, 0
      %p111 = por %p109, %p110
      %s113 = sadd.s32 %s112, 1
      %p116 = scmp.eq.s32.totalorder %s22, 1
      %p117 = scmp.ne.s32.totalorder %s112, %s114
      %p118 = scmp.eq.s32.totalorder %s22, 0
      %p119 = por %p117, %p118
      %p120 = scmp.ne.s32.totalorder %s112, %s114
      %p121 = scmp.eq.s32.totalorder %s27, 1
      %p122 = por %p120, %p121
      %p123 = scmp.ne.s32.totalorder %s114, %s115
      %p124 = scmp.eq.s32.totalorder %s27, 0
      %p125 = por %p123, %p124
      %p126 = scmp.ne.s32.totalorder %s114, %s115
      %p127 = scmp.eq.s32.totalorder %s28, 1
      %p128 = por %p126, %p127
      %p130 = scmp.ne.s32.totalorder %s115, %s129
      %p131 = scmp.eq.s32.totalorder %s28, 0
      %p132 = por %p130, %p131
      %s133 = ssub.s32 %s29, %s41
      %p134 = scmp.eq.s32.totalorder %s133, 0
      %s136 = sadd.s32 %s135, 1
      %s137 = scalar_select %p134, %s135, %s136
      %p140 = pneg %p134
      %p141 = scmp.eq.s32.totalorder %s22, 1
      %p142 = por %p140, %p141
      %p143 = scmp.ne.s32.totalorder %s135, %s138
      %p144 = scmp.eq.s32.totalorder %s22, 0
      %p145 = por %p143, %p144
      %p146 = scmp.ne.s32.totalorder %s135, %s138
      %p147 = scmp.eq.s32.totalorder %s27, 1
      %p148 = por %p146, %p147
      %p149 = scmp.ne.s32.totalorder %s138, %s139
      %p150 = scmp.eq.s32.totalorder %s27, 0
      %p151 = por %p149, %p150
      %p152 = scmp.ne.s32.totalorder %s138, %s139
      %p153 = scmp.eq.s32.totalorder %s28, 1
      %p154 = por %p152, %p153
      %p156 = scmp.ne.s32.totalorder %s139, %s155
      %p157 = scmp.eq.s32.totalorder %s28, 0
      %p158 = por %p156, %p157
      %s159 = ssub.s32 %s29, %s41
      %s160 = ssub.s32 %s30, %s37
      %s161 = sor.u32 %s159, %s160
      %p162 = scmp.eq.s32.totalorder %s161, 0
      %s164 = sadd.s32 %s163, 1
      %s165 = scalar_select %p162, %s163, %s164
      %p168 = pneg %p162
      %p169 = scmp.eq.s32.totalorder %s22, 1
      %p170 = por %p168, %p169
      %p171 = scmp.ne.s32.totalorder %s163, %s166
      %p172 = scmp.eq.s32.totalorder %s22, 0
      %p173 = por %p171, %p172
      %p174 = scmp.ne.s32.totalorder %s163, %s166
      %p175 = scmp.eq.s32.totalorder %s27, 1
      %p176 = por %p174, %p175
      %p177 = scmp.ne.s32.totalorder %s166, %s167
      %p178 = scmp.eq.s32.totalorder %s27, 0
      %p179 = por %p177, %p178
      %p180 = scmp.ne.s32.totalorder %s166, %s167
      %p181 = scmp.eq.s32.totalorder %s28, 1
      %p182 = por %p180, %p181
      %p184 = scmp.ne.s32.totalorder %s167, %s183
      %p185 = scmp.eq.s32.totalorder %s28, 0
      %p186 = por %p184, %p185
      %s187 = ssub.s32 %s29, %s41
      %p188 = scmp.eq.s32.totalorder %s187, 0
      %s190 = sadd.s32 %s189, 1
      %s191 = scalar_select %p188, %s189, %s190
      %p194 = pneg %p188
      %p195 = scmp.eq.s32.totalorder %s22, 1
      %p196 = por %p194, %p195
      %p197 = scmp.ne.s32.totalorder %s189, %s192
      %p198 = scmp.eq.s32.totalorder %s22, 0
      %p199 = por %p197, %p198
      %p200 = scmp.ne.s32.totalorder %s189, %s192
      %p201 = scmp.eq.s32.totalorder %s27, 1
      %p202 = por %p200, %p201
      %p203 = scmp.ne.s32.totalorder %s192, %s193
      %p204 = scmp.eq.s32.totalorder %s27, 0
      %p205 = por %p203, %p204
      %p206 = scmp.ne.s32.totalorder %s192, %s193
      %p207 = scmp.eq.s32.totalorder %s28, 1
      %p208 = por %p206, %p207
      %p210 = scmp.ne.s32.totalorder %s193, %s209
      %p211 = scmp.eq.s32.totalorder %s28, 0
      %p212 = por %p210, %p211
      %s213 = ssub.s32 %s29, %s41
      %p214 = scmp.eq.s32.totalorder %s213, 0
      %s216 = sadd.s32 %s215, 1
      %s217 = scalar_select %p214, %s215, %s216
      %p220 = pneg %p214
      %p221 = scmp.eq.s32.totalorder %s22, 1
      %p222 = por %p220, %p221
      %p223 = scmp.ne.s32.totalorder %s215, %s218
      %p224 = scmp.eq.s32.totalorder %s22, 0
      %p225 = por %p223, %p224
      %p226 = scmp.ne.s32.totalorder %s215, %s218
      %p227 = scmp.eq.s32.totalorder %s27, 1
      %p228 = por %p226, %p227
      %p229 = scmp.ne.s32.totalorder %s218, %s219
      %p230 = scmp.eq.s32.totalorder %s27, 0
      %p231 = por %p229, %p230
      %p232 = scmp.ne.s32.totalorder %s218, %s219
      %p233 = scmp.eq.s32.totalorder %s28, 1
      %p234 = por %p232, %p233
      %p236 = scmp.ne.s32.totalorder %s219, %s235
      %p237 = scmp.eq.s32.totalorder %s28, 0
      %p238 = por %p236, %p237
      %p239 = scmp.le.s32.totalorder 1, %s22
      %p240 = scmp.lt.s32.totalorder %s22, 3
      %p241 = pnand %p239, %p240
      %p242 = pneg %p241
      // Predicated region
      $region9: #{tpu_custom_call.1} parent=5 // pred_check
        _
      $region10: #{tpu_custom_call.1} parent=5 // pred_check_branch
        %244 = sbr.rel (%p241) target = $region12
      $region11: #{tpu_custom_call.1} parent=5 // pred_region
        %s245 = ssub.s32 %s22, 1
        // Predicated region
        $region13: #{tpu_custom_call.1} parent=11 // pred_check
          %p246 = pneg %p83
        $region14: #{tpu_custom_call.1} parent=11 // pred_check_branch
          %248 = sbr.rel (%p246) target = $region16
        $region15: #{tpu_custom_call.1} parent=11 // pred_region
          %s250 = ssub.s32 512, 512
          %251 = vsyncadd [#allocation10], %s250
          %s252 = sshll.u32 [#allocation9], 4
          %s253 = int_to_ptr.vmem [resolvable:$true] %s252
          %258 = dma.hbm_to_vmem [thread:$0]  %s1, 512, %s253, [#allocation10], 128, 128, 8
        $region16: #{tpu_custom_call.1} parent=11 // pred_fallthru
          _
        // Predicated region
        $region17: #{tpu_custom_call.1} parent=11 // pred_check
          %p259 = pneg %p104
        $region18: #{tpu_custom_call.1} parent=11 // pred_check_branch
          %261 = sbr.rel (%p259) target = $region20
        $region19: #{tpu_custom_call.1} parent=11 // pred_region
          %s263 = ssub.s32 512, 512
          %264 = vsyncadd [#allocation10], %s263
          %s265 = sshll.u32 [#allocation11], 4
          %s266 = int_to_ptr.vmem [resolvable:$true] %s265
          %271 = dma.hbm_to_vmem [thread:$0]  %s2, 512, %s266, [#allocation10], 128, 128, 8
        $region20: #{tpu_custom_call.1} parent=11 // pred_fallthru
          _
        // Predicated region
        $region21: #{tpu_custom_call.1} parent=11 // pred_check
          %p272 = pneg %p125
        $region22: #{tpu_custom_call.1} parent=11 // pred_check_branch
          %274 = sbr.rel (%p272) target = $region24
        $region23: #{tpu_custom_call.1} parent=11 // pred_region
          _
        $region24: #{tpu_custom_call.1} parent=11 // pred_fallthru
          _
        // Predicated region
        $region25: #{tpu_custom_call.1} parent=11 // pred_check
          %p275 = pneg %p151
        $region26: #{tpu_custom_call.1} parent=11 // pred_check_branch
          %277 = sbr.rel (%p275) target = $region28
        $region27: #{tpu_custom_call.1} parent=11 // pred_region
          %p278 = scmp.lt.s32.totalorder %s31, 0
          %s279 = scalar_select %p278, %s31, 0
          %s280 = smul.addr %s279, 2
          %s281 = scalar_lea.vmem %s4, %s280
        $region28: #{tpu_custom_call.1} parent=11 // pred_fallthru
          _
      $region12: #{tpu_custom_call.1} parent=5 // pred_fallthru
        _
      %p282 = scmp.lt.s32.totalorder %s22, 2
      // Predicated region
      $region29: #{tpu_custom_call.1} parent=5 // pred_check
        %p283 = pneg %p282
      $region30: #{tpu_custom_call.1} parent=5 // pred_check_branch
        %285 = sbr.rel (%p283) target = $region32
      $region31: #{tpu_custom_call.1} parent=5 // pred_region
        // Predicated region
        $region33: #{tpu_custom_call.1} parent=31 // pred_check
          %p286 = pneg %p56
        $region34: #{tpu_custom_call.1} parent=31 // pred_check_branch
          %288 = sbr.rel (%p286) target = $region36
        $region35: #{tpu_custom_call.1} parent=31 // pred_region
          %s289 = sand.u32 %s46, 1
          %s290 = scalar_lea.sflag [#allocation7], %s289
          %s291 = sand.u32 %s46, 1
          %s292 = smul.addr %s291, 16
          %s293 = scalar_lea.vmem [#allocation6], %s292
          %s294 = smul.u32 2, %s29
          %s296 = ssub.s32 256, 256
          %297 = vsyncadd %s290, %s296
          %s298 = smul.addr %s294, 2
          %s299 = sadd.s32 %s30, %s298
          %s300 = smul.addr %s299, 128
          %s301 = scalar_lea.hbm %s0, %s300
          %s302 = sshll.u32 %s293, 4
          %s303 = int_to_ptr.vmem [resolvable:$true] %s302
          %308 = dma.hbm_to_vmem [thread:$0]  %s301, 256, %s303, %s290, 256, 128, 8
        $region36: #{tpu_custom_call.1} parent=31 // pred_fallthru
          _
      $region32: #{tpu_custom_call.1} parent=5 // pred_fallthru
        _
      %p309 = scmp.le.s32.totalorder 1, %s22
      %p310 = scmp.lt.s32.totalorder %s22, 3
      %p311 = pnand %p309, %p310
      %p312 = pneg %p311
      // Predicated region
      $region37: #{tpu_custom_call.1} parent=5 // pred_check
        _
      $region38: #{tpu_custom_call.1} parent=5 // pred_check_branch
        %314 = sbr.rel (%p311) target = $region40
      $region39: #{tpu_custom_call.1} parent=5 // pred_region
        %s315 = ssub.s32 %s22, 1
        %s316 = sand.u32 %s49, 1
        %s317 = scalar_lea.sflag [#allocation7], %s316
        %s318 = sand.u32 %s49, 1
        %s319 = smul.addr %s318, 16
        %s320 = scalar_lea.vmem [#allocation6], %s319
        // Predicated region
        $region41: #{tpu_custom_call.1} parent=39 // pred_check
          %p321 = pneg %p62
        $region42: #{tpu_custom_call.1} parent=39 // pred_check_branch
          %323 = sbr.rel (%p321) target = $region44
        $region43: #{tpu_custom_call.1} parent=39 // pred_region
          %324 = dma.done %s317, 256
        $region44: #{tpu_custom_call.1} parent=39 // pred_fallthru
          _
        // Predicated region
        $region45: #{tpu_custom_call.1} parent=39 // pred_check
          %p325 = pneg %p83
        $region46: #{tpu_custom_call.1} parent=39 // pred_check_branch
          %327 = sbr.rel (%p325) target = $region48
        $region47: #{tpu_custom_call.1} parent=39 // pred_region
          %328 = dma.done [#allocation10], 512
        $region48: #{tpu_custom_call.1} parent=39 // pred_fallthru
          _
        // Predicated region
        $region49: #{tpu_custom_call.1} parent=39 // pred_check
          %p329 = pneg %p104
        $region50: #{tpu_custom_call.1} parent=39 // pred_check_branch
          %331 = sbr.rel (%p329) target = $region52
        $region51: #{tpu_custom_call.1} parent=39 // pred_region
          %332 = dma.done [#allocation10], 512
        $region52: #{tpu_custom_call.1} parent=39 // pred_fallthru
          _
        %s333 = sand.u32 %s49, 1
        %s334 = scalar_lea.sflag [#allocation7], %s333
        %s335 = sand.u32 %s49, 1
        %s336 = smul.addr %s335, 16
        %s337 = scalar_lea.vmem [#allocation6], %s336
        %p338 = pneg %p62
        %p339 = pneg %p59
        %p340 = pneg %p83
        %p341 = pneg %p80
        %p342 = pneg %p104
        %p343 = pneg %p101
        %p344 = pneg %p125
        %p345 = pneg %p122
        %p346 = scmp.lt.s32.totalorder %s31, 0
        %s347 = scalar_select %p346, %s31, 0
        %s348 = smul.addr %s347, 2
        %s349 = scalar_lea.vmem %s4, %s348
        %p350 = pneg %p151
        %p351 = pneg %p148
        %p352 = pneg %p179
        %p353 = pneg %p176
        %s354 = sand.u32 %s166, 1
        %s355 = scalar_lea.sflag [#allocation8], %s354
        %s356 = sand.u32 %s166, 1
        %s357 = smul.addr %s356, 16
        %s358 = scalar_lea.vmem [#allocation12], %s357
        %p359 = pneg %p205
        %p360 = pneg %p202
        %p361 = pneg %p231
        %p362 = pneg %p228
        %s363 = smul.u32 2, %s31
        %p364 = scmp.lt.s32.totalorder %s31, 0
        %s365 = scalar_select %p364, %s31, 0
        %s366 = smul.addr %s365, 2
        %s367 = scalar_lea.vmem %s4, %s366
        %s368 = smul.u32 2, %s31
        %p369 = scmp.eq.s32.totalorder %s32, 0
        // Predicated region
        $region53: #{tpu_custom_call.1} parent=39 // pred_check
          %p370 = pneg %p369
        $region54: #{tpu_custom_call.1} parent=39 // pred_check_branch
          %372 = sbr.rel (%p370) target = $region56
        $region55: #{tpu_custom_call.1} parent=39 // pred_region
          %vm373 = vcmask 254976
          %374 = vst.msk [vmem:[#allocation4] sm:$0x3] %vm373, 0.0
          %375 = vst.msk [vmem:[#allocation5] sm:$0x3] %vm373, 0.0
          %376 = vst.msk [vmem:[#allocation13] sm:$0x3] %vm373, 0.0
          %377 = vst.msk [vmem:[#allocation15] sm:$0x3] %vm373, 0.0
        $region56: #{tpu_custom_call.1} parent=39 // pred_fallthru
          _
        %v378 = vld [vmem:[%s320] sm:$0xff]
        %v379 = vld [vmem:[%s320 + $0x8] sm:$0xff]
        %v380 = vcombine.high %v378, 0.0
        %v382 = vunpack.c.l.s4 1983009808
        %v383 = vunpack.c.0.s8 %v382
        %v384 = vlaneseq
        %v385 = vshrl.u32 %v384, 7
        %v386 = vsub.s32 %v383, %v385
        %v387 = vrot.slane %v378, %v386
        %v389 = vunpack.c.l.s4 1983009808
        %v390 = vunpack.c.0.s8 %v389
        %v391 = vlaneseq
        %v392 = vshrl.u32 %v391, 7
        %v393 = vsub.s32 %v390, %v392
        %v394 = vrot.slane %v380, %v393
        %v395 = vcombine.high %v379, 0.0
        %v397 = vunpack.c.l.s4 1983009808
        %v398 = vunpack.c.0.s8 %v397
        %v399 = vlaneseq
        %v400 = vshrl.u32 %v399, 7
        %v401 = vsub.s32 %v398, %v400
        %v402 = vrot.slane %v379, %v401
        %v404 = vunpack.c.l.s4 1983009808
        %v405 = vunpack.c.0.s8 %v404
        %v406 = vlaneseq
        %v407 = vshrl.u32 %v406, 7
        %v408 = vsub.s32 %v405, %v407
        %v409 = vrot.slane %v395, %v408
        %v410 = vcombine.low %v387, %v402
        %v411 = vcombine.high %v387, %v402
        %v413 = vunpack.c.l.s4 1934713408
        %v414 = vunpack.c.0.s8 %v413
        %v415 = vlaneseq
        %v416 = vshrl.u32 %v415, 7
        %v417 = vsub.s32 %v414, %v416
        %v418 = vrot.slane %v410, %v417
        %v420 = vunpack.c.l.s4 1934713408
        %v421 = vunpack.c.0.s8 %v420
        %v422 = vlaneseq
        %v423 = vshrl.u32 %v422, 7
        %v424 = vsub.s32 %v421, %v423
        %v425 = vrot.slane %v411, %v424
        %v426 = vcombine.low %v394, %v409
        %v427 = vcombine.high %v394, %v409
        %v429 = vunpack.c.l.s4 1934713408
        %v430 = vunpack.c.0.s8 %v429
        %v431 = vlaneseq
        %v432 = vshrl.u32 %v431, 7
        %v433 = vsub.s32 %v430, %v432
        %v434 = vrot.slane %v426, %v433
        %v436 = vunpack.c.l.s4 1934713408
        %v437 = vunpack.c.0.s8 %v436
        %v438 = vlaneseq
        %v439 = vshrl.u32 %v438, 7
        %v440 = vsub.s32 %v437, %v439
        %v441 = vrot.slane %v427, %v440
        %v442 = vcombine.high %v418, 0.0
        %v443 = vcombine.high %v425, 0.0
        %v444 = vcombine.high %v434, 0.0
        %v445 = vcombine.high %v441, 0.0
        %v446 = vld [vmem:[#allocation9] sm:$0xff]
        %v447 = vld [vmem:[#allocation9 + $0x8] sm:$0xff]
        %v448 = vld [vmem:[#allocation9 + $0x10] sm:$0xff]
        %v449 = vld [vmem:[#allocation9 + $0x18] sm:$0xff]
        %v450 = vld [vmem:[%s3] sm:$0x1]
        %v452 = vlaneseq
        %v453 = vshrl.u32 %v452, 7
        %v454 = vsub.s32 0, %v453
        %v455 = vrot.slane %v450, %v454
        %v465 = vcombine.low %v418, %v442
        %v466 = vcombine.low %v425, %v443
        %v468 = vunpack.c.l.s4 1983009808
        %v469 = vunpack.c.0.s8 %v468
        %v470 = vlaneseq
        %v471 = vshrl.u32 %v470, 7
        %v472 = vsub.s32 %v469, %v471
        %v473 = vrot.slane %v465, %v472
        %v475 = vunpack.c.l.s4 1983009808
        %v476 = vunpack.c.0.s8 %v475
        %v477 = vlaneseq
        %v478 = vshrl.u32 %v477, 7
        %v479 = vsub.s32 %v476, %v478
        %v480 = vrot.slane %v466, %v479
        %v481 = vcombine.low %v473, %v480
        %v482 = vcombine.low %v434, %v444
        %v483 = vcombine.low %v441, %v445
        %v485 = vunpack.c.l.s4 1983009808
        %v486 = vunpack.c.0.s8 %v485
        %v487 = vlaneseq
        %v488 = vshrl.u32 %v487, 7
        %v489 = vsub.s32 %v486, %v488
        %v490 = vrot.slane %v482, %v489
        %v492 = vunpack.c.l.s4 1983009808
        %v493 = vunpack.c.0.s8 %v492
        %v494 = vlaneseq
        %v495 = vshrl.u32 %v494, 7
        %v496 = vsub.s32 %v493, %v495
        %v497 = vrot.slane %v483, %v496
        %v498 = vcombine.low %v490, %v497
        %vm499 = vcmask 261120
        %v500 = vsel %vm499, %v481, 0
        %v502 = vsel %vm499, %v498, 0
        %504 = vmatprep.subr.mxu0 0.0
        %505 = vmatpush1.msra.mxu0 %v446
        %506 = vmatprep.subr.mxu0 0.0
        %507 = vmatpush1.msra.mxu0 %v447
        %508 = vmatprep.subr.mxu0 0.0
        %509 = vmatpush1.msra.mxu0 %v448
        %510 = vmatprep.subr.mxu0 0.0
        %511 = vmatpush1.msra.mxu0 %v449
        %512 = vmatprep.subr.mxu0 0.0
        %513 = vmatpush1.msra.mxu0 0.0
        %514 = vmatprep.subr.mxu0 0.0
        %515 = vmatpush1.msra.mxu0 0.0
        %516 = vmatprep.subr.mxu0 0.0
        %517 = vmatpush1.msra.mxu0 0.0
        %518 = vmatprep.subr.mxu0 0.0
        %519 = vmatpush1.msra.mxu0 0.0
        %520 = vmatprep.subr.mxu0 0.0
        %521 = vmatpush1.msra.mxu0 0.0
        %522 = vmatprep.subr.mxu0 0.0
        %523 = vmatpush1.msra.mxu0 0.0
        %524 = vmatprep.subr.mxu0 0.0
        %525 = vmatpush1.msra.mxu0 0.0
        %526 = vmatprep.subr.mxu0 0.0
        %527 = vmatpush1.msra.mxu0 0.0
        %528 = vmatprep.subr.mxu0 0.0
        %529 = vmatpush1.msra.mxu0 0.0
        %530 = vmatprep.subr.mxu0 0.0
        %531 = vmatpush1.msra.mxu0 0.0
        %532 = vmatprep.subr.mxu0 0.0
        %533 = vmatpush1.msra.mxu0 0.0
        %534 = vmatprep.subr.mxu0 0.0
        %535 = vmatpush1.msra.mxu0 0.0
        %536 = vmatprep.subr.mxu0 0.0
        %537 = vmatpush1.msra.mxu0 0.0
        %538 = vmatprep.subr.mxu0 0.0
        %539 = vmatpush1.msra.mxu0 0.0
        %540 = vmatprep.subr.mxu0 0.0
        %541 = vmatpush1.msra.mxu0 0.0
        %542 = vmatprep.subr.mxu0 0.0
        %543 = vmatpush1.msra.mxu0 0.0
        %544 = vmatprep.subr.mxu0 0.0
        %545 = vmatpush1.msra.mxu0 0.0
        %546 = vmatprep.subr.mxu0 0.0
        %547 = vmatpush1.msra.mxu0 0.0
        %548 = vmatprep.subr.mxu0 0.0
        %549 = vmatpush1.msra.mxu0 0.0
        %550 = vmatprep.subr.mxu0 0.0
        %551 = vmatpush1.msra.mxu0 0.0
        %552 = vmatprep.subr.mxu0 0.0
        %553 = vmatpush1.msra.mxu0 0.0
        %554 = vmatprep.subr.mxu0 0.0
        %555 = vmatpush1.msra.mxu0 0.0
        %556 = vmatprep.subr.mxu0 0.0
        %557 = vmatpush1.msra.mxu0 0.0
        %558 = vmatprep.subr.mxu0 0.0
        %559 = vmatpush1.msra.mxu0 0.0
        %560 = vmatprep.subr.mxu0 0.0
        %561 = vmatpush1.msra.mxu0 0.0
        %562 = vmatprep.subr.mxu0 0.0
        %563 = vmatpush1.msra.mxu0 0.0
        %564 = vmatprep.subr.mxu0 0.0
        %565 = vmatpush1.msra.mxu0 0.0
        %566 = vmatprep.subr.mxu0 0.0
        %567 = vmatpush1.msra.mxu0 0.0
        %568 = vmatprep.mubr.f32.mxu0 0.0
        %569 = vmatmul.mubr.f32.gmra.mrb[0].mxu0 %v500
        %v570 = vpop.f32.mrb[0].mxu0
        %v571 = vadd.f32 %v455, %v570
        %v572 = vpop.f32.mrb[0].mxu0
        %573 = vmatprep.mubr.f32.mxu0 0.0
        %574 = vmatmul.mubr.f32.gmra.mrb[0].mxu0 %v502
        %v575 = vpop.f32.mrb[0].mxu0
        %v576 = vadd.f32 %v455, %v575
        %v577 = vpop.f32.mrb[0].mxu0
        %578 = vdwg.mxu0
        %v581 = vcombine.high %v571, %v571
        %v583 = vunpack.c.l.s4 1983009808
        %v584 = vunpack.c.0.s8 %v583
        %v585 = vlaneseq
        %v586 = vshrl.u32 %v585, 7
        %v587 = vsub.s32 %v584, %v586
        %v588 = vrot.slane %v571, %v587
        %v590 = vunpack.c.l.s4 1983009808
        %v591 = vunpack.c.0.s8 %v590
        %v592 = vlaneseq
        %v593 = vshrl.u32 %v592, 7
        %v594 = vsub.s32 %v591, %v593
        %v595 = vrot.slane %v581, %v594
        %v596 = vcombine.high %v588, %v588
        %v597 = vcombine.high %v595, %v595
        %v598 = vcombine.high %v576, %v576
        %v600 = vunpack.c.l.s4 1983009808
        %v601 = vunpack.c.0.s8 %v600
        %v602 = vlaneseq
        %v603 = vshrl.u32 %v602, 7
        %v604 = vsub.s32 %v601, %v603
        %v605 = vrot.slane %v576, %v604
        %v607 = vunpack.c.l.s4 1983009808
        %v608 = vunpack.c.0.s8 %v607
        %v609 = vlaneseq
        %v610 = vshrl.u32 %v609, 7
        %v611 = vsub.s32 %v608, %v610
        %v612 = vrot.slane %v598, %v611
        %v613 = vcombine.high %v605, %v605
        %v614 = vcombine.high %v612, %v612
        %623 = vst [vmem:[#allocation2] sm:$0x3] %v588
        %624 = vst [vmem:[#allocation2 + $0x2] sm:$0x3] %v596
        %625 = vst [vmem:[#allocation2 + $0x4] sm:$0x3] %v595
        %626 = vst [vmem:[#allocation2 + $0x6] sm:$0x3] %v597
        %627 = vst [vmem:[#allocation2 + $0x8] sm:$0x3] %v605
        %628 = vst [vmem:[#allocation2 + $0xa] sm:$0x3] %v613
        %629 = vst [vmem:[#allocation2 + $0xc] sm:$0x3] %v612
        %630 = vst [vmem:[#allocation2 + $0xe] sm:$0x3] %v614
        %v631 = vld [vmem:[#allocation11] sm:$0xff]
        %v632 = vld [vmem:[#allocation11 + $0x8] sm:$0xff]
        %v633 = vld [vmem:[#allocation11 + $0x10] sm:$0xff]
        %v634 = vld [vmem:[#allocation11 + $0x18] sm:$0xff]
        %v635 = vld [vmem:[%s367] sm:$0x3]
        %s636 = smul.u32 %s32, 8
        %v637 = vld [vmem:[#allocation4] sm:$0x3]
        %v638 = vld [vmem:[#allocation5] sm:$0x3]
        %v639 = vld [vmem:[#allocation13] sm:$0x3]
        %v640 = vld [vmem:[#allocation15] sm:$0x3]
        %v641 = vld [vmem:[#allocation2] sm:$0x3]
        %v643 = vsel %vm499, %v637, 0
        %645 = vmatprep.subr.mxu0 0.0
        %646 = vmatpush1.msra.mxu0 %v631
        %647 = vmatprep.subr.mxu0 0.0
        %648 = vmatpush1.msra.mxu0 %v632
        %649 = vmatprep.subr.mxu0 0.0
        %650 = vmatpush1.msra.mxu0 %v633
        %651 = vmatprep.subr.mxu0 0.0
        %652 = vmatpush1.msra.mxu0 %v634
        %653 = vmatprep.subr.mxu0 0.0
        %654 = vmatpush1.msra.mxu0 0.0
        %655 = vmatprep.subr.mxu0 0.0
        %656 = vmatpush1.msra.mxu0 0.0
        %657 = vmatprep.subr.mxu0 0.0
        %658 = vmatpush1.msra.mxu0 0.0
        %659 = vmatprep.subr.mxu0 0.0
        %660 = vmatpush1.msra.mxu0 0.0
        %661 = vmatprep.subr.mxu0 0.0
        %662 = vmatpush1.msra.mxu0 0.0
        %663 = vmatprep.subr.mxu0 0.0
        %664 = vmatpush1.msra.mxu0 0.0
        %665 = vmatprep.subr.mxu0 0.0
        %666 = vmatpush1.msra.mxu0 0.0
        %667 = vmatprep.subr.mxu0 0.0
        %668 = vmatpush1.msra.mxu0 0.0
        %669 = vmatprep.subr.mxu0 0.0
        %670 = vmatpush1.msra.mxu0 0.0
        %671 = vmatprep.subr.mxu0 0.0
        %672 = vmatpush1.msra.mxu0 0.0
        %673 = vmatprep.subr.mxu0 0.0
        %674 = vmatpush1.msra.mxu0 0.0
        %675 = vmatprep.subr.mxu0 0.0
        %676 = vmatpush1.msra.mxu0 0.0
        %677 = vmatprep.subr.mxu0 0.0
        %678 = vmatpush1.msra.mxu0 0.0
        %679 = vmatprep.subr.mxu0 0.0
        %680 = vmatpush1.msra.mxu0 0.0
        %681 = vmatprep.subr.mxu0 0.0
        %682 = vmatpush1.msra.mxu0 0.0
        %683 = vmatprep.subr.mxu0 0.0
        %684 = vmatpush1.msra.mxu0 0.0
        %685 = vmatprep.subr.mxu0 0.0
        %686 = vmatpush1.msra.mxu0 0.0
        %687 = vmatprep.subr.mxu0 0.0
        %688 = vmatpush1.msra.mxu0 0.0
        %689 = vmatprep.subr.mxu0 0.0
        %690 = vmatpush1.msra.mxu0 0.0
        %691 = vmatprep.subr.mxu0 0.0
        %692 = vmatpush1.msra.mxu0 0.0
        %693 = vmatprep.subr.mxu0 0.0
        %694 = vmatpush1.msra.mxu0 0.0
        %695 = vmatprep.subr.mxu0 0.0
        %696 = vmatpush1.msra.mxu0 0.0
        %697 = vmatprep.subr.mxu0 0.0
        %698 = vmatpush1.msra.mxu0 0.0
        %699 = vmatprep.subr.mxu0 0.0
        %700 = vmatpush1.msra.mxu0 0.0
        %701 = vmatprep.subr.mxu0 0.0
        %702 = vmatpush1.msra.mxu0 0.0
        %703 = vmatprep.subr.mxu0 0.0
        %704 = vmatpush1.msra.mxu0 0.0
        %705 = vmatprep.subr.mxu0 0.0
        %706 = vmatpush1.msra.mxu0 0.0
        %707 = vmatprep.subr.mxu0 0.0
        %708 = vmatpush1.msra.mxu0 0.0
        %709 = vmatprep.mubr.f32.mxu0 0.0
        %710 = vmatmul.mubr.f32.gmra.mrb[0].mxu0 %v643
        %v711 = vpop.f32.mrb[0].mxu0
        %v712 = vadd.f32 0.0, %v711
        %v713 = vpop.f32.mrb[0].mxu0
        %714 = vdwg.mxu0
        %v715 = vadd.f32 %v641, %v712
        %v716 = vxor.u32 %v715, 2147483648
        %v717 = vmul.f32 %v716, 1.442695
        %v718 = vpow.pop %v717
        %v719 = vadd.f32 %v718, 1.0
        %v720 = vrcp.pop %v719
        %v721 = vmul.f32 1.0, %v720
        %v722 = vtanh.pop %v715
        %724 = vrot.lane.b32.xlu0 %v638, 32
        %v725 = vpop.permute.xlu0 %724
        %v727 = vmul.f32 %v721, %v725
        %729 = vrot.lane.b32.xlu0 %v722, 64
        %v730 = vpop.permute.xlu0 %729
        %v732 = vmul.f32 %v721, %v730
        %734 = vrot.lane.b32.xlu0 %v732, 32
        %v735 = vpop.permute.xlu0 %734
        %v737 = vadd.f32 %v727, %v735
        %v738 = vtanh.pop %v737
        %740 = vrot.lane.b32.xlu0 %v738, 64
        %v741 = vpop.permute.xlu0 %740
        %v743 = vmul.f32 %v721, %v741
        %745 = vrot.lane.b32.xlu0 %v743, 32
        %v746 = vpop.permute.xlu0 %745
        %vm748 = vcmask 254976
        %749 = vst.msk [vmem:[#allocation3] sm:$0x3] %vm748, %v746
        %v750 = vsub.s32 %v635, 1
        %v751 = vstv %s636
        %vm752 = vcmp.eq.s32.totalorder %v750, %v751
        %v753 = vsel %vm752, 1, 0
        %754 = vset.pattern.permute.xlu0 0
        %755 = vperm.xlu0 %754, %v753
        %v756 = vpop.permute.xlu0 %755
        %vm757 = vcmp.eq.s32.totalorder %v756, 1
        %759 = vrot.lane.b32.xlu0 %v639, 96
        %v760 = vpop.permute.xlu0 %759
        %v762 = vsel %vm757, %v743, %v760
        %764 = vrot.lane.b32.xlu0 %v640, 32
        %v765 = vpop.permute.xlu0 %764
        %v767 = vsel %vm757, %v737, %v765
        %s768 = scalar_lea.vmem [#allocation2], 2
        %v769 = vld [vmem:[%s768] sm:$0x3]
        %v770 = vsel %vm499, %v746, 0
        %772 = vmatprep.subr.mxu0 0.0
        %773 = vmatpush1.msra.mxu0 %v631
        %774 = vmatprep.subr.mxu0 0.0
        %775 = vmatpush1.msra.mxu0 %v632
        %776 = vmatprep.subr.mxu0 0.0
        %777 = vmatpush1.msra.mxu0 %v633
        %778 = vmatprep.subr.mxu0 0.0
        %779 = vmatpush1.msra.mxu0 %v634
        %780 = vmatprep.subr.mxu0 0.0
        %781 = vmatpush1.msra.mxu0 0.0
        %782 = vmatprep.subr.mxu0 0.0
        %783 = vmatpush1.msra.mxu0 0.0
        %784 = vmatprep.subr.mxu0 0.0
        %785 = vmatpush1.msra.mxu0 0.0
        %786 = vmatprep.subr.mxu0 0.0
        %787 = vmatpush1.msra.mxu0 0.0
        %788 = vmatprep.subr.mxu0 0.0
        %789 = vmatpush1.msra.mxu0 0.0
        %790 = vmatprep.subr.mxu0 0.0
        %791 = vmatpush1.msra.mxu0 0.0
        %792 = vmatprep.subr.mxu0 0.0
        %793 = vmatpush1.msra.mxu0 0.0
        %794 = vmatprep.subr.mxu0 0.0
        %795 = vmatpush1.msra.mxu0 0.0
        %796 = vmatprep.subr.mxu0 0.0
        %797 = vmatpush1.msra.mxu0 0.0
        %798 = vmatprep.subr.mxu0 0.0
        %799 = vmatpush1.msra.mxu0 0.0
        %800 = vmatprep.subr.mxu0 0.0
        %801 = vmatpush1.msra.mxu0 0.0
        %802 = vmatprep.subr.mxu0 0.0
        %803 = vmatpush1.msra.mxu0 0.0
        %804 = vmatprep.subr.mxu0 0.0
        %805 = vmatpush1.msra.mxu0 0.0
        %806 = vmatprep.subr.mxu0 0.0
        %807 = vmatpush1.msra.mxu0 0.0
        %808 = vmatprep.subr.mxu0 0.0
        %809 = vmatpush1.msra.mxu0 0.0
        %810 = vmatprep.subr.mxu0 0.0
        %811 = vmatpush1.msra.mxu0 0.0
        %812 = vmatprep.subr.mxu0 0.0
        %813 = vmatpush1.msra.mxu0 0.0
        %814 = vmatprep.subr.mxu0 0.0
        %815 = vmatpush1.msra.mxu0 0.0
        %816 = vmatprep.subr.mxu0 0.0
        %817 = vmatpush1.msra.mxu0 0.0
        %818 = vmatprep.subr.mxu0 0.0
        %819 = vmatpush1.msra.mxu0 0.0
        %820 = vmatprep.subr.mxu0 0.0
        %821 = vmatpush1.msra.mxu0 0.0
        %822 = vmatprep.subr.mxu0 0.0
        %823 = vmatpush1.msra.mxu0 0.0
        %824 = vmatprep.subr.mxu0 0.0
        %825 = vmatpush1.msra.mxu0 0.0
        %826 = vmatprep.subr.mxu0 0.0
        %827 = vmatpush1.msra.mxu0 0.0
        %828 = vmatprep.subr.mxu0 0.0
        %829 = vmatpush1.msra.mxu0 0.0
        %830 = vmatprep.subr.mxu0 0.0
        %831 = vmatpush1.msra.mxu0 0.0
        %832 = vmatprep.subr.mxu0 0.0
        %833 = vmatpush1.msra.mxu0 0.0
        %834 = vmatprep.subr.mxu0 0.0
        %835 = vmatpush1.msra.mxu0 0.0
        %836 = vmatprep.mubr.f32.mxu0 0.0
        %837 = vmatmul.mubr.f32.gmra.mrb[0].mxu0 %v770
        %v838 = vpop.f32.mrb[0].mxu0
        %v839 = vadd.f32 0.0, %v838
        %v840 = vpop.f32.mrb[0].mxu0
        %841 = vdwg.mxu0
        %v842 = vadd.f32 %v769, %v839
        %v843 = vxor.u32 %v842, 2147483648
        %v844 = vmul.f32 %v843, 1.442695
        %v845 = vpow.pop %v844
        %v846 = vadd.f32 %v845, 1.0
        %v847 = vrcp.pop %v846
        %v848 = vmul.f32 1.0, %v847
        %v849 = vtanh.pop %v842
        %v850 = vmul.f32 %v848, %v737
        %852 = vrot.lane.b32.xlu0 %v849, 64
        %v853 = vpop.permute.xlu0 %852
        %v855 = vmul.f32 %v848, %v853
        %857 = vrot.lane.b32.xlu0 %v855, 32
        %v858 = vpop.permute.xlu0 %857
        %v860 = vadd.f32 %v850, %v858
        %v861 = vtanh.pop %v860
        %863 = vrot.lane.b32.xlu0 %v861, 64
        %v864 = vpop.permute.xlu0 %863
        %v866 = vmul.f32 %v848, %v864
        %868 = vrot.lane.b32.xlu0 %v866, 32
        %v869 = vpop.permute.xlu0 %868
        %s871 = scalar_lea.vmem [#allocation3], 2
        %872 = vst.msk [vmem:[%s871] sm:$0x3] %vm748, %v869
        %s873 = sadd.s32 %s636, 1
        %v874 = vstv %s873
        %vm875 = vcmp.eq.s32.totalorder %v750, %v874
        %v876 = vsel %vm875, 1, 0
        %877 = vset.pattern.permute.xlu0 0
        %878 = vperm.xlu0 %877, %v876
        %v879 = vpop.permute.xlu0 %878
        %vm880 = vcmp.eq.s32.totalorder %v879, 1
        %v881 = vsel %vm880, %v866, %v762
        %v882 = vsel %vm880, %v860, %v767
        %s883 = scalar_lea.vmem [#allocation2], 4
        %v884 = vld [vmem:[%s883] sm:$0x3]
        %v885 = vsel %vm499, %v869, 0
        %887 = vmatprep.subr.mxu0 0.0
        %888 = vmatpush1.msra.mxu0 %v631
        %889 = vmatprep.subr.mxu0 0.0
        %890 = vmatpush1.msra.mxu0 %v632
        %891 = vmatprep.subr.mxu0 0.0
        %892 = vmatpush1.msra.mxu0 %v633
        %893 = vmatprep.subr.mxu0 0.0
        %894 = vmatpush1.msra.mxu0 %v634
        %895 = vmatprep.subr.mxu0 0.0
        %896 = vmatpush1.msra.mxu0 0.0
        %897 = vmatprep.subr.mxu0 0.0
        %898 = vmatpush1.msra.mxu0 0.0
        %899 = vmatprep.subr.mxu0 0.0
        %900 = vmatpush1.msra.mxu0 0.0
        %901 = vmatprep.subr.mxu0 0.0
        %902 = vmatpush1.msra.mxu0 0.0
        %903 = vmatprep.subr.mxu0 0.0
        %904 = vmatpush1.msra.mxu0 0.0
        %905 = vmatprep.subr.mxu0 0.0
        %906 = vmatpush1.msra.mxu0 0.0
        %907 = vmatprep.subr.mxu0 0.0
        %908 = vmatpush1.msra.mxu0 0.0
        %909 = vmatprep.subr.mxu0 0.0
        %910 = vmatpush1.msra.mxu0 0.0
        %911 = vmatprep.subr.mxu0 0.0
        %912 = vmatpush1.msra.mxu0 0.0
        %913 = vmatprep.subr.mxu0 0.0
        %914 = vmatpush1.msra.mxu0 0.0
        %915 = vmatprep.subr.mxu0 0.0
        %916 = vmatpush1.msra.mxu0 0.0
        %917 = vmatprep.subr.mxu0 0.0
        %918 = vmatpush1.msra.mxu0 0.0
        %919 = vmatprep.subr.mxu0 0.0
        %920 = vmatpush1.msra.mxu0 0.0
        %921 = vmatprep.subr.mxu0 0.0
        %922 = vmatpush1.msra.mxu0 0.0
        %923 = vmatprep.subr.mxu0 0.0
        %924 = vmatpush1.msra.mxu0 0.0
        %925 = vmatprep.subr.mxu0 0.0
        %926 = vmatpush1.msra.mxu0 0.0
        %927 = vmatprep.subr.mxu0 0.0
        %928 = vmatpush1.msra.mxu0 0.0
        %929 = vmatprep.subr.mxu0 0.0
        %930 = vmatpush1.msra.mxu0 0.0
        %931 = vmatprep.subr.mxu0 0.0
        %932 = vmatpush1.msra.mxu0 0.0
        %933 = vmatprep.subr.mxu0 0.0
        %934 = vmatpush1.msra.mxu0 0.0
        %935 = vmatprep.subr.mxu0 0.0
        %936 = vmatpush1.msra.mxu0 0.0
        %937 = vmatprep.subr.mxu0 0.0
        %938 = vmatpush1.msra.mxu0 0.0
        %939 = vmatprep.subr.mxu0 0.0
        %940 = vmatpush1.msra.mxu0 0.0
        %941 = vmatprep.subr.mxu0 0.0
        %942 = vmatpush1.msra.mxu0 0.0
        %943 = vmatprep.subr.mxu0 0.0
        %944 = vmatpush1.msra.mxu0 0.0
        %945 = vmatprep.subr.mxu0 0.0
        %946 = vmatpush1.msra.mxu0 0.0
        %947 = vmatprep.subr.mxu0 0.0
        %948 = vmatpush1.msra.mxu0 0.0
        %949 = vmatprep.subr.mxu0 0.0
        %950 = vmatpush1.msra.mxu0 0.0
        %951 = vmatprep.mubr.f32.mxu0 0.0
        %952 = vmatmul.mubr.f32.gmra.mrb[0].mxu0 %v885
        %v953 = vpop.f32.mrb[0].mxu0
        %v954 = vadd.f32 0.0, %v953
        %v955 = vpop.f32.mrb[0].mxu0
        %956 = vdwg.mxu0
        %v957 = vadd.f32 %v884, %v954
        %v958 = vxor.u32 %v957, 2147483648
        %v959 = vmul.f32 %v958, 1.442695
        %v960 = vpow.pop %v959
        %v961 = vadd.f32 %v960, 1.0
        %v962 = vrcp.pop %v961
        %v963 = vmul.f32 1.0, %v962
        %v964 = vtanh.pop %v957
        %v965 = vmul.f32 %v963, %v860
        %967 = vrot.lane.b32.xlu0 %v964, 64
        %v968 = vpop.permute.xlu0 %967
        %v970 = vmul.f32 %v963, %v968
        %972 = vrot.lane.b32.xlu0 %v970, 32
        %v973 = vpop.permute.xlu0 %972
        %v975 = vadd.f32 %v965, %v973
        %v976 = vtanh.pop %v975
        %978 = vrot.lane.b32.xlu0 %v976, 64
        %v979 = vpop.permute.xlu0 %978
        %v981 = vmul.f32 %v963, %v979
        %983 = vrot.lane.b32.xlu0 %v981, 32
        %v984 = vpop.permute.xlu0 %983
        %s986 = scalar_lea.vmem [#allocation3], 4
        %987 = vst.msk [vmem:[%s986] sm:$0x3] %vm748, %v984
        %s988 = sadd.s32 %s636, 2
        %v989 = vstv %s988
        %vm990 = vcmp.eq.s32.totalorder %v750, %v989
        %v991 = vsel %vm990, 1, 0
        %992 = vset.pattern.permute.xlu0 0
        %993 = vperm.xlu0 %992, %v991
        %v994 = vpop.permute.xlu0 %993
        %vm995 = vcmp.eq.s32.totalorder %v994, 1
        %v996 = vsel %vm995, %v981, %v881
        %v997 = vsel %vm995, %v975, %v882
        %s998 = scalar_lea.vmem [#allocation2], 6
        %v999 = vld [vmem:[%s998] sm:$0x3]
        %v1000 = vsel %vm499, %v984, 0
        %1002 = vmatprep.subr.mxu0 0.0
        %1003 = vmatpush1.msra.mxu0 %v631
        %1004 = vmatprep.subr.mxu0 0.0
        %1005 = vmatpush1.msra.mxu0 %v632
        %1006 = vmatprep.subr.mxu0 0.0
        %1007 = vmatpush1.msra.mxu0 %v633
        %1008 = vmatprep.subr.mxu0 0.0
        %1009 = vmatpush1.msra.mxu0 %v634
        %1010 = vmatprep.subr.mxu0 0.0
        %1011 = vmatpush1.msra.mxu0 0.0
        %1012 = vmatprep.subr.mxu0 0.0
        %1013 = vmatpush1.msra.mxu0 0.0
        %1014 = vmatprep.subr.mxu0 0.0
        %1015 = vmatpush1.msra.mxu0 0.0
        %1016 = vmatprep.subr.mxu0 0.0
        %1017 = vmatpush1.msra.mxu0 0.0
        %1018 = vmatprep.subr.mxu0 0.0
        %1019 = vmatpush1.msra.mxu0 0.0
        %1020 = vmatprep.subr.mxu0 0.0
        %1021 = vmatpush1.msra.mxu0 0.0
        %1022 = vmatprep.subr.mxu0 0.0
        %1023 = vmatpush1.msra.mxu0 0.0
        %1024 = vmatprep.subr.mxu0 0.0
        %1025 = vmatpush1.msra.mxu0 0.0
        %1026 = vmatprep.subr.mxu0 0.0
        %1027 = vmatpush1.msra.mxu0 0.0
        %1028 = vmatprep.subr.mxu0 0.0
        %1029 = vmatpush1.msra.mxu0 0.0
        %1030 = vmatprep.subr.mxu0 0.0
        %1031 = vmatpush1.msra.mxu0 0.0
        %1032 = vmatprep.subr.mxu0 0.0
        %1033 = vmatpush1.msra.mxu0 0.0
        %1034 = vmatprep.subr.mxu0 0.0
        %1035 = vmatpush1.msra.mxu0 0.0
        %1036 = vmatprep.subr.mxu0 0.0
        %1037 = vmatpush1.msra.mxu0 0.0
        %1038 = vmatprep.subr.mxu0 0.0
        %1039 = vmatpush1.msra.mxu0 0.0
        %1040 = vmatprep.subr.mxu0 0.0
        %1041 = vmatpush1.msra.mxu0 0.0
        %1042 = vmatprep.subr.mxu0 0.0
        %1043 = vmatpush1.msra.mxu0 0.0
        %1044 = vmatprep.subr.mxu0 0.0
        %1045 = vmatpush1.msra.mxu0 0.0
        %1046 = vmatprep.subr.mxu0 0.0
        %1047 = vmatpush1.msra.mxu0 0.0
        %1048 = vmatprep.subr.mxu0 0.0
        %1049 = vmatpush1.msra.mxu0 0.0
        %1050 = vmatprep.subr.mxu0 0.0
        %1051 = vmatpush1.msra.mxu0 0.0
        %1052 = vmatprep.subr.mxu0 0.0
        %1053 = vmatpush1.msra.mxu0 0.0
        %1054 = vmatprep.subr.mxu0 0.0
        %1055 = vmatpush1.msra.mxu0 0.0
        %1056 = vmatprep.subr.mxu0 0.0
        %1057 = vmatpush1.msra.mxu0 0.0
        %1058 = vmatprep.subr.mxu0 0.0
        %1059 = vmatpush1.msra.mxu0 0.0
        %1060 = vmatprep.subr.mxu0 0.0
        %1061 = vmatpush1.msra.mxu0 0.0
        %1062 = vmatprep.subr.mxu0 0.0
        %1063 = vmatpush1.msra.mxu0 0.0
        %1064 = vmatprep.subr.mxu0 0.0
        %1065 = vmatpush1.msra.mxu0 0.0
        %1066 = vmatprep.mubr.f32.mxu0 0.0
        %1067 = vmatmul.mubr.f32.gmra.mrb[0].mxu0 %v1000
        %v1068 = vpop.f32.mrb[0].mxu0
        %v1069 = vadd.f32 0.0, %v1068
        %v1070 = vpop.f32.mrb[0].mxu0
        %1071 = vdwg.mxu0
        %v1072 = vadd.f32 %v999, %v1069
        %v1073 = vxor.u32 %v1072, 2147483648
        %v1074 = vmul.f32 %v1073, 1.442695
        %v1075 = vpow.pop %v1074
        %v1076 = vadd.f32 %v1075, 1.0
        %v1077 = vrcp.pop %v1076
        %v1078 = vmul.f32 1.0, %v1077
        %v1079 = vtanh.pop %v1072
        %v1080 = vmul.f32 %v1078, %v975
        %1082 = vrot.lane.b32.xlu0 %v1079, 64
        %v1083 = vpop.permute.xlu0 %1082
        %v1085 = vmul.f32 %v1078, %v1083
        %1087 = vrot.lane.b32.xlu0 %v1085, 32
        %v1088 = vpop.permute.xlu0 %1087
        %v1090 = vadd.f32 %v1080, %v1088
        %v1091 = vtanh.pop %v1090
        %1093 = vrot.lane.b32.xlu0 %v1091, 64
        %v1094 = vpop.permute.xlu0 %1093
        %v1096 = vmul.f32 %v1078, %v1094
        %1098 = vrot.lane.b32.xlu0 %v1096, 32
        %v1099 = vpop.permute.xlu0 %1098
        %s1101 = scalar_lea.vmem [#allocation3], 6
        %1102 = vst.msk [vmem:[%s1101] sm:$0x3] %vm748, %v1099
        %s1103 = sadd.s32 %s636, 3
        %v1104 = vstv %s1103
        %vm1105 = vcmp.eq.s32.totalorder %v750, %v1104
        %v1106 = vsel %vm1105, 1, 0
        %1107 = vset.pattern.permute.xlu0 0
        %1108 = vperm.xlu0 %1107, %v1106
        %v1109 = vpop.permute.xlu0 %1108
        %vm1110 = vcmp.eq.s32.totalorder %v1109, 1
        %v1111 = vsel %vm1110, %v1096, %v996
        %v1112 = vsel %vm1110, %v1090, %v997
        %s1113 = scalar_lea.vmem [#allocation2], 8
        %v1114 = vld [vmem:[%s1113] sm:$0x3]
        %v1115 = vsel %vm499, %v1099, 0
        %1117 = vmatprep.subr.mxu0 0.0
        %1118 = vmatpush1.msra.mxu0 %v631
        %1119 = vmatprep.subr.mxu0 0.0
        %1120 = vmatpush1.msra.mxu0 %v632
        %1121 = vmatprep.subr.mxu0 0.0
        %1122 = vmatpush1.msra.mxu0 %v633
        %1123 = vmatprep.subr.mxu0 0.0
        %1124 = vmatpush1.msra.mxu0 %v634
        %1125 = vmatprep.subr.mxu0 0.0
        %1126 = vmatpush1.msra.mxu0 0.0
        %1127 = vmatprep.subr.mxu0 0.0
        %1128 = vmatpush1.msra.mxu0 0.0
        %1129 = vmatprep.subr.mxu0 0.0
        %1130 = vmatpush1.msra.mxu0 0.0
        %1131 = vmatprep.subr.mxu0 0.0
        %1132 = vmatpush1.msra.mxu0 0.0
        %1133 = vmatprep.subr.mxu0 0.0
        %1134 = vmatpush1.msra.mxu0 0.0
        %1135 = vmatprep.subr.mxu0 0.0
        %1136 = vmatpush1.msra.mxu0 0.0
        %1137 = vmatprep.subr.mxu0 0.0
        %1138 = vmatpush1.msra.mxu0 0.0
        %1139 = vmatprep.subr.mxu0 0.0
        %1140 = vmatpush1.msra.mxu0 0.0
        %1141 = vmatprep.subr.mxu0 0.0
        %1142 = vmatpush1.msra.mxu0 0.0
        %1143 = vmatprep.subr.mxu0 0.0
        %1144 = vmatpush1.msra.mxu0 0.0
        %1145 = vmatprep.subr.mxu0 0.0
        %1146 = vmatpush1.msra.mxu0 0.0
        %1147 = vmatprep.subr.mxu0 0.0
        %1148 = vmatpush1.msra.mxu0 0.0
        %1149 = vmatprep.subr.mxu0 0.0
        %1150 = vmatpush1.msra.mxu0 0.0
        %1151 = vmatprep.subr.mxu0 0.0
        %1152 = vmatpush1.msra.mxu0 0.0
        %1153 = vmatprep.subr.mxu0 0.0
        %1154 = vmatpush1.msra.mxu0 0.0
        %1155 = vmatprep.subr.mxu0 0.0
        %1156 = vmatpush1.msra.mxu0 0.0
        %1157 = vmatprep.subr.mxu0 0.0
        %1158 = vmatpush1.msra.mxu0 0.0
        %1159 = vmatprep.subr.mxu0 0.0
        %1160 = vmatpush1.msra.mxu0 0.0
        %1161 = vmatprep.subr.mxu0 0.0
        %1162 = vmatpush1.msra.mxu0 0.0
        %1163 = vmatprep.subr.mxu0 0.0
        %1164 = vmatpush1.msra.mxu0 0.0
        %1165 = vmatprep.subr.mxu0 0.0
        %1166 = vmatpush1.msra.mxu0 0.0
        %1167 = vmatprep.subr.mxu0 0.0
        %1168 = vmatpush1.msra.mxu0 0.0
        %1169 = vmatprep.subr.mxu0 0.0
        %1170 = vmatpush1.msra.mxu0 0.0
        %1171 = vmatprep.subr.mxu0 0.0
        %1172 = vmatpush1.msra.mxu0 0.0
        %1173 = vmatprep.subr.mxu0 0.0
        %1174 = vmatpush1.msra.mxu0 0.0
        %1175 = vmatprep.subr.mxu0 0.0
        %1176 = vmatpush1.msra.mxu0 0.0
        %1177 = vmatprep.subr.mxu0 0.0
        %1178 = vmatpush1.msra.mxu0 0.0
        %1179 = vmatprep.subr.mxu0 0.0
        %1180 = vmatpush1.msra.mxu0 0.0
        %1181 = vmatprep.mubr.f32.mxu0 0.0
        %1182 = vmatmul.mubr.f32.gmra.mrb[0].mxu0 %v1115
        %v1183 = vpop.f32.mrb[0].mxu0
        %v1184 = vadd.f32 0.0, %v1183
        %v1185 = vpop.f32.mrb[0].mxu0
        %1186 = vdwg.mxu0
        %v1187 = vadd.f32 %v1114, %v1184
        %v1188 = vxor.u32 %v1187, 2147483648
        %v1189 = vmul.f32 %v1188, 1.442695
        %v1190 = vpow.pop %v1189
        %v1191 = vadd.f32 %v1190, 1.0
        %v1192 = vrcp.pop %v1191
        %v1193 = vmul.f32 1.0, %v1192
        %v1194 = vtanh.pop %v1187
        %v1195 = vmul.f32 %v1193, %v1090
        %1197 = vrot.lane.b32.xlu0 %v1194, 64
        %v1198 = vpop.permute.xlu0 %1197
        %v1200 = vmul.f32 %v1193, %v1198
        %1202 = vrot.lane.b32.xlu0 %v1200, 32
        %v1203 = vpop.permute.xlu0 %1202
        %v1205 = vadd.f32 %v1195, %v1203
        %v1206 = vtanh.pop %v1205
        %1208 = vrot.lane.b32.xlu0 %v1206, 64
        %v1209 = vpop.permute.xlu0 %1208
        %v1211 = vmul.f32 %v1193, %v1209
        %1213 = vrot.lane.b32.xlu0 %v1211, 32
        %v1214 = vpop.permute.xlu0 %1213
        %s1216 = scalar_lea.vmem [#allocation3], 8
        %1217 = vst.msk [vmem:[%s1216] sm:$0x3] %vm748, %v1214
        %s1218 = sadd.s32 %s636, 4
        %v1219 = vstv %s1218
        %vm1220 = vcmp.eq.s32.totalorder %v750, %v1219
        %v1221 = vsel %vm1220, 1, 0
        %1222 = vset.pattern.permute.xlu0 0
        %1223 = vperm.xlu0 %1222, %v1221
        %v1224 = vpop.permute.xlu0 %1223
        %vm1225 = vcmp.eq.s32.totalorder %v1224, 1
        %v1226 = vsel %vm1225, %v1211, %v1111
        %v1227 = vsel %vm1225, %v1205, %v1112
        %s1228 = scalar_lea.vmem [#allocation2], 10
        %v1229 = vld [vmem:[%s1228] sm:$0x3]
        %v1230 = vsel %vm499, %v1214, 0
        %1232 = vmatprep.subr.mxu0 0.0
        %1233 = vmatpush1.msra.mxu0 %v631
        %1234 = vmatprep.subr.mxu0 0.0
        %1235 = vmatpush1.msra.mxu0 %v632
        %1236 = vmatprep.subr.mxu0 0.0
        %1237 = vmatpush1.msra.mxu0 %v633
        %1238 = vmatprep.subr.mxu0 0.0
        %1239 = vmatpush1.msra.mxu0 %v634
        %1240 = vmatprep.subr.mxu0 0.0
        %1241 = vmatpush1.msra.mxu0 0.0
        %1242 = vmatprep.subr.mxu0 0.0
        %1243 = vmatpush1.msra.mxu0 0.0
        %1244 = vmatprep.subr.mxu0 0.0
        %1245 = vmatpush1.msra.mxu0 0.0
        %1246 = vmatprep.subr.mxu0 0.0
        %1247 = vmatpush1.msra.mxu0 0.0
        %1248 = vmatprep.subr.mxu0 0.0
        %1249 = vmatpush1.msra.mxu0 0.0
        %1250 = vmatprep.subr.mxu0 0.0
        %1251 = vmatpush1.msra.mxu0 0.0
        %1252 = vmatprep.subr.mxu0 0.0
        %1253 = vmatpush1.msra.mxu0 0.0
        %1254 = vmatprep.subr.mxu0 0.0
        %1255 = vmatpush1.msra.mxu0 0.0
        %1256 = vmatprep.subr.mxu0 0.0
        %1257 = vmatpush1.msra.mxu0 0.0
        %1258 = vmatprep.subr.mxu0 0.0
        %1259 = vmatpush1.msra.mxu0 0.0
        %1260 = vmatprep.subr.mxu0 0.0
        %1261 = vmatpush1.msra.mxu0 0.0
        %1262 = vmatprep.subr.mxu0 0.0
        %1263 = vmatpush1.msra.mxu0 0.0
        %1264 = vmatprep.subr.mxu0 0.0
        %1265 = vmatpush1.msra.mxu0 0.0
        %1266 = vmatprep.subr.mxu0 0.0
        %1267 = vmatpush1.msra.mxu0 0.0
        %1268 = vmatprep.subr.mxu0 0.0
        %1269 = vmatpush1.msra.mxu0 0.0
        %1270 = vmatprep.subr.mxu0 0.0
        %1271 = vmatpush1.msra.mxu0 0.0
        %1272 = vmatprep.subr.mxu0 0.0
        %1273 = vmatpush1.msra.mxu0 0.0
        %1274 = vmatprep.subr.mxu0 0.0
        %1275 = vmatpush1.msra.mxu0 0.0
        %1276 = vmatprep.subr.mxu0 0.0
        %1277 = vmatpush1.msra.mxu0 0.0
        %1278 = vmatprep.subr.mxu0 0.0
        %1279 = vmatpush1.msra.mxu0 0.0
        %1280 = vmatprep.subr.mxu0 0.0
        %1281 = vmatpush1.msra.mxu0 0.0
        %1282 = vmatprep.subr.mxu0 0.0
        %1283 = vmatpush1.msra.mxu0 0.0
        %1284 = vmatprep.subr.mxu0 0.0
        %1285 = vmatpush1.msra.mxu0 0.0
        %1286 = vmatprep.subr.mxu0 0.0
        %1287 = vmatpush1.msra.mxu0 0.0
        %1288 = vmatprep.subr.mxu0 0.0
        %1289 = vmatpush1.msra.mxu0 0.0
        %1290 = vmatprep.subr.mxu0 0.0
        %1291 = vmatpush1.msra.mxu0 0.0
        %1292 = vmatprep.subr.mxu0 0.0
        %1293 = vmatpush1.msra.mxu0 0.0
        %1294 = vmatprep.subr.mxu0 0.0
        %1295 = vmatpush1.msra.mxu0 0.0
        %1296 = vmatprep.mubr.f32.mxu0 0.0
        %1297 = vmatmul.mubr.f32.gmra.mrb[0].mxu0 %v1230
        %v1298 = vpop.f32.mrb[0].mxu0
        %v1299 = vadd.f32 0.0, %v1298
        %v1300 = vpop.f32.mrb[0].mxu0
        %1301 = vdwg.mxu0
        %v1302 = vadd.f32 %v1229, %v1299
        %v1303 = vxor.u32 %v1302, 2147483648
        %v1304 = vmul.f32 %v1303, 1.442695
        %v1305 = vpow.pop %v1304
        %v1306 = vadd.f32 %v1305, 1.0
        %v1307 = vrcp.pop %v1306
        %v1308 = vmul.f32 1.0, %v1307
        %v1309 = vtanh.pop %v1302
        %v1310 = vmul.f32 %v1308, %v1205
        %1312 = vrot.lane.b32.xlu0 %v1309, 64
        %v1313 = vpop.permute.xlu0 %1312
        %v1315 = vmul.f32 %v1308, %v1313
        %1317 = vrot.lane.b32.xlu0 %v1315, 32
        %v1318 = vpop.permute.xlu0 %1317
        %v1320 = vadd.f32 %v1310, %v1318
        %v1321 = vtanh.pop %v1320
        %1323 = vrot.lane.b32.xlu0 %v1321, 64
        %v1324 = vpop.permute.xlu0 %1323
        %v1326 = vmul.f32 %v1308, %v1324
        %1328 = vrot.lane.b32.xlu0 %v1326, 32
        %v1329 = vpop.permute.xlu0 %1328
        %s1331 = scalar_lea.vmem [#allocation3], 10
        %1332 = vst.msk [vmem:[%s1331] sm:$0x3] %vm748, %v1329
        %s1333 = sadd.s32 %s636, 5
        %v1334 = vstv %s1333
        %vm1335 = vcmp.eq.s32.totalorder %v750, %v1334
        %v1336 = vsel %vm1335, 1, 0
        %1337 = vset.pattern.permute.xlu0 0
        %1338 = vperm.xlu0 %1337, %v1336
        %v1339 = vpop.permute.xlu0 %1338
        %vm1340 = vcmp.eq.s32.totalorder %v1339, 1
        %v1341 = vsel %vm1340, %v1326, %v1226
        %v1342 = vsel %vm1340, %v1320, %v1227
        %s1343 = scalar_lea.vmem [#allocation2], 12
        %v1344 = vld [vmem:[%s1343] sm:$0x3]
        %v1345 = vsel %vm499, %v1329, 0
        %1347 = vmatprep.subr.mxu0 0.0
        %1348 = vmatpush1.msra.mxu0 %v631
        %1349 = vmatprep.subr.mxu0 0.0
        %1350 = vmatpush1.msra.mxu0 %v632
        %1351 = vmatprep.subr.mxu0 0.0
        %1352 = vmatpush1.msra.mxu0 %v633
        %1353 = vmatprep.subr.mxu0 0.0
        %1354 = vmatpush1.msra.mxu0 %v634
        %1355 = vmatprep.subr.mxu0 0.0
        %1356 = vmatpush1.msra.mxu0 0.0
        %1357 = vmatprep.subr.mxu0 0.0
        %1358 = vmatpush1.msra.mxu0 0.0
        %1359 = vmatprep.subr.mxu0 0.0
        %1360 = vmatpush1.msra.mxu0 0.0
        %1361 = vmatprep.subr.mxu0 0.0
        %1362 = vmatpush1.msra.mxu0 0.0
        %1363 = vmatprep.subr.mxu0 0.0
        %1364 = vmatpush1.msra.mxu0 0.0
        %1365 = vmatprep.subr.mxu0 0.0
        %1366 = vmatpush1.msra.mxu0 0.0
        %1367 = vmatprep.subr.mxu0 0.0
        %1368 = vmatpush1.msra.mxu0 0.0
        %1369 = vmatprep.subr.mxu0 0.0
        %1370 = vmatpush1.msra.mxu0 0.0
        %1371 = vmatprep.subr.mxu0 0.0
        %1372 = vmatpush1.msra.mxu0 0.0
        %1373 = vmatprep.subr.mxu0 0.0
        %1374 = vmatpush1.msra.mxu0 0.0
        %1375 = vmatprep.subr.mxu0 0.0
        %1376 = vmatpush1.msra.mxu0 0.0
        %1377 = vmatprep.subr.mxu0 0.0
        %1378 = vmatpush1.msra.mxu0 0.0
        %1379 = vmatprep.subr.mxu0 0.0
        %1380 = vmatpush1.msra.mxu0 0.0
        %1381 = vmatprep.subr.mxu0 0.0
        %1382 = vmatpush1.msra.mxu0 0.0
        %1383 = vmatprep.subr.mxu0 0.0
        %1384 = vmatpush1.msra.mxu0 0.0
        %1385 = vmatprep.subr.mxu0 0.0
        %1386 = vmatpush1.msra.mxu0 0.0
        %1387 = vmatprep.subr.mxu0 0.0
        %1388 = vmatpush1.msra.mxu0 0.0
        %1389 = vmatprep.subr.mxu0 0.0
        %1390 = vmatpush1.msra.mxu0 0.0
        %1391 = vmatprep.subr.mxu0 0.0
        %1392 = vmatpush1.msra.mxu0 0.0
        %1393 = vmatprep.subr.mxu0 0.0
        %1394 = vmatpush1.msra.mxu0 0.0
        %1395 = vmatprep.subr.mxu0 0.0
        %1396 = vmatpush1.msra.mxu0 0.0
        %1397 = vmatprep.subr.mxu0 0.0
        %1398 = vmatpush1.msra.mxu0 0.0
        %1399 = vmatprep.subr.mxu0 0.0
        %1400 = vmatpush1.msra.mxu0 0.0
        %1401 = vmatprep.subr.mxu0 0.0
        %1402 = vmatpush1.msra.mxu0 0.0
        %1403 = vmatprep.subr.mxu0 0.0
        %1404 = vmatpush1.msra.mxu0 0.0
        %1405 = vmatprep.subr.mxu0 0.0
        %1406 = vmatpush1.msra.mxu0 0.0
        %1407 = vmatprep.subr.mxu0 0.0
        %1408 = vmatpush1.msra.mxu0 0.0
        %1409 = vmatprep.subr.mxu0 0.0
        %1410 = vmatpush1.msra.mxu0 0.0
        %1411 = vmatprep.mubr.f32.mxu0 0.0
        %1412 = vmatmul.mubr.f32.gmra.mrb[0].mxu0 %v1345
        %v1413 = vpop.f32.mrb[0].mxu0
        %v1414 = vadd.f32 0.0, %v1413
        %v1415 = vpop.f32.mrb[0].mxu0
        %1416 = vdwg.mxu0
        %v1417 = vadd.f32 %v1344, %v1414
        %v1418 = vxor.u32 %v1417, 2147483648
        %v1419 = vmul.f32 %v1418, 1.442695
        %v1420 = vpow.pop %v1419
        %v1421 = vadd.f32 %v1420, 1.0
        %v1422 = vrcp.pop %v1421
        %v1423 = vmul.f32 1.0, %v1422
        %v1424 = vtanh.pop %v1417
        %v1425 = vmul.f32 %v1423, %v1320
        %1427 = vrot.lane.b32.xlu0 %v1424, 64
        %v1428 = vpop.permute.xlu0 %1427
        %v1430 = vmul.f32 %v1423, %v1428
        %1432 = vrot.lane.b32.xlu0 %v1430, 32
        %v1433 = vpop.permute.xlu0 %1432
        %v1435 = vadd.f32 %v1425, %v1433
        %v1436 = vtanh.pop %v1435
        %1438 = vrot.lane.b32.xlu0 %v1436, 64
        %v1439 = vpop.permute.xlu0 %1438
        %v1441 = vmul.f32 %v1423, %v1439
        %1443 = vrot.lane.b32.xlu0 %v1441, 32
        %v1444 = vpop.permute.xlu0 %1443
        %s1446 = scalar_lea.vmem [#allocation3], 12
        %1447 = vst.msk [vmem:[%s1446] sm:$0x3] %vm748, %v1444
        %s1448 = sadd.s32 %s636, 6
        %v1449 = vstv %s1448
        %vm1450 = vcmp.eq.s32.totalorder %v750, %v1449
        %v1451 = vsel %vm1450, 1, 0
        %1452 = vset.pattern.permute.xlu0 0
        %1453 = vperm.xlu0 %1452, %v1451
        %v1454 = vpop.permute.xlu0 %1453
        %vm1455 = vcmp.eq.s32.totalorder %v1454, 1
        %v1456 = vsel %vm1455, %v1441, %v1341
        %v1457 = vsel %vm1455, %v1435, %v1342
        %s1458 = scalar_lea.vmem [#allocation2], 14
        %v1459 = vld [vmem:[%s1458] sm:$0x3]
        %v1460 = vsel %vm499, %v1444, 0
        %1462 = vmatprep.subr.mxu0 0.0
        %1463 = vmatpush1.msra.mxu0 %v631
        %1464 = vmatprep.subr.mxu0 0.0
        %1465 = vmatpush1.msra.mxu0 %v632
        %1466 = vmatprep.subr.mxu0 0.0
        %1467 = vmatpush1.msra.mxu0 %v633
        %1468 = vmatprep.subr.mxu0 0.0
        %1469 = vmatpush1.msra.mxu0 %v634
        %1470 = vmatprep.subr.mxu0 0.0
        %1471 = vmatpush1.msra.mxu0 0.0
        %1472 = vmatprep.subr.mxu0 0.0
        %1473 = vmatpush1.msra.mxu0 0.0
        %1474 = vmatprep.subr.mxu0 0.0
        %1475 = vmatpush1.msra.mxu0 0.0
        %1476 = vmatprep.subr.mxu0 0.0
        %1477 = vmatpush1.msra.mxu0 0.0
        %1478 = vmatprep.subr.mxu0 0.0
        %1479 = vmatpush1.msra.mxu0 0.0
        %1480 = vmatprep.subr.mxu0 0.0
        %1481 = vmatpush1.msra.mxu0 0.0
        %1482 = vmatprep.subr.mxu0 0.0
        %1483 = vmatpush1.msra.mxu0 0.0
        %1484 = vmatprep.subr.mxu0 0.0
        %1485 = vmatpush1.msra.mxu0 0.0
        %1486 = vmatprep.subr.mxu0 0.0
        %1487 = vmatpush1.msra.mxu0 0.0
        %1488 = vmatprep.subr.mxu0 0.0
        %1489 = vmatpush1.msra.mxu0 0.0
        %1490 = vmatprep.subr.mxu0 0.0
        %1491 = vmatpush1.msra.mxu0 0.0
        %1492 = vmatprep.subr.mxu0 0.0
        %1493 = vmatpush1.msra.mxu0 0.0
        %1494 = vmatprep.subr.mxu0 0.0
        %1495 = vmatpush1.msra.mxu0 0.0
        %1496 = vmatprep.subr.mxu0 0.0
        %1497 = vmatpush1.msra.mxu0 0.0
        %1498 = vmatprep.subr.mxu0 0.0
        %1499 = vmatpush1.msra.mxu0 0.0
        %1500 = vmatprep.subr.mxu0 0.0
        %1501 = vmatpush1.msra.mxu0 0.0
        %1502 = vmatprep.subr.mxu0 0.0
        %1503 = vmatpush1.msra.mxu0 0.0
        %1504 = vmatprep.subr.mxu0 0.0
        %1505 = vmatpush1.msra.mxu0 0.0
        %1506 = vmatprep.subr.mxu0 0.0
        %1507 = vmatpush1.msra.mxu0 0.0
        %1508 = vmatprep.subr.mxu0 0.0
        %1509 = vmatpush1.msra.mxu0 0.0
        %1510 = vmatprep.subr.mxu0 0.0
        %1511 = vmatpush1.msra.mxu0 0.0
        %1512 = vmatprep.subr.mxu0 0.0
        %1513 = vmatpush1.msra.mxu0 0.0
        %1514 = vmatprep.subr.mxu0 0.0
        %1515 = vmatpush1.msra.mxu0 0.0
        %1516 = vmatprep.subr.mxu0 0.0
        %1517 = vmatpush1.msra.mxu0 0.0
        %1518 = vmatprep.subr.mxu0 0.0
        %1519 = vmatpush1.msra.mxu0 0.0
        %1520 = vmatprep.subr.mxu0 0.0
        %1521 = vmatpush1.msra.mxu0 0.0
        %1522 = vmatprep.subr.mxu0 0.0
        %1523 = vmatpush1.msra.mxu0 0.0
        %1524 = vmatprep.subr.mxu0 0.0
        %1525 = vmatpush1.msra.mxu0 0.0
        %1526 = vmatprep.mubr.f32.mxu0 0.0
        %1527 = vmatmul.mubr.f32.gmra.mrb[0].mxu0 %v1460
        %v1528 = vpop.f32.mrb[0].mxu0
        %v1529 = vadd.f32 0.0, %v1528
        %v1530 = vpop.f32.mrb[0].mxu0
        %1531 = vdwg.mxu0
        %v1532 = vadd.f32 %v1459, %v1529
        %v1533 = vxor.u32 %v1532, 2147483648
        %v1534 = vmul.f32 %v1533, 1.442695
        %v1535 = vpow.pop %v1534
        %v1536 = vadd.f32 %v1535, 1.0
        %v1537 = vrcp.pop %v1536
        %v1538 = vmul.f32 1.0, %v1537
        %v1539 = vtanh.pop %v1532
        %v1540 = vmul.f32 %v1538, %v1435
        %1542 = vrot.lane.b32.xlu0 %v1539, 64
        %v1543 = vpop.permute.xlu0 %1542
        %v1545 = vmul.f32 %v1538, %v1543
        %1547 = vrot.lane.b32.xlu0 %v1545, 32
        %v1548 = vpop.permute.xlu0 %1547
        %v1550 = vadd.f32 %v1540, %v1548
        %v1551 = vtanh.pop %v1550
        %1553 = vrot.lane.b32.xlu0 %v1551, 64
        %v1554 = vpop.permute.xlu0 %1553
        %v1556 = vmul.f32 %v1538, %v1554
        %1558 = vrot.lane.b32.xlu0 %v1556, 32
        %v1559 = vpop.permute.xlu0 %1558
        %s1561 = scalar_lea.vmem [#allocation3], 14
        %1562 = vst.msk [vmem:[%s1561] sm:$0x3] %vm748, %v1559
        %s1563 = sadd.s32 %s636, 7
        %v1564 = vstv %s1563
        %vm1565 = vcmp.eq.s32.totalorder %v750, %v1564
        %v1566 = vsel %vm1565, 1, 0
        %1567 = vset.pattern.permute.xlu0 0
        %1568 = vperm.xlu0 %1567, %v1566
        %v1569 = vpop.permute.xlu0 %1568
        %vm1570 = vcmp.eq.s32.totalorder %v1569, 1
        %v1571 = vsel %vm1570, %v1556, %v1456
        %v1572 = vsel %vm1570, %v1550, %v1457
        %1573 = vst.msk [vmem:[#allocation4] sm:$0x3] %vm748, %v1559
        %1575 = vrot.lane.b32.xlu0 %v1550, 96
        %v1576 = vpop.permute.xlu0 %1575
        %1578 = vst.msk [vmem:[#allocation5] sm:$0x3] %vm748, %v1576
        %1580 = vrot.lane.b32.xlu0 %v1571, 32
        %v1581 = vpop.permute.xlu0 %1580
        %1583 = vst.msk [vmem:[#allocation13] sm:$0x3] %vm748, %v1581
        %1585 = vrot.lane.b32.xlu0 %v1572, 96
        %v1586 = vpop.permute.xlu0 %1585
        %1588 = vst.msk [vmem:[#allocation15] sm:$0x3] %vm748, %v1586
        %v1589 = vadd.s32 %v751, 1
        %v1590 = vadd.s32 %v751, 2
        %v1591 = vadd.s32 %v751, 3
        %v1592 = vadd.s32 %v751, 4
        %v1593 = vadd.s32 %v751, 5
        %v1594 = vadd.s32 %v751, 6
        %v1595 = vadd.s32 %v751, 7
        %vm1596 = vcmp.lt.s32.totalorder %v751, %v635
        %vm1597 = vcmp.lt.s32.totalorder %v1589, %v635
        %vm1598 = vcmp.lt.s32.totalorder %v1590, %v635
        %vm1599 = vcmp.lt.s32.totalorder %v1591, %v635
        %vm1600 = vcmp.lt.s32.totalorder %v1592, %v635
        %vm1601 = vcmp.lt.s32.totalorder %v1593, %v635
        %vm1602 = vcmp.lt.s32.totalorder %v1594, %v635
        %vm1603 = vcmp.lt.s32.totalorder %v1595, %v635
        %v1604 = vld [vmem:[#allocation3] sm:$0x3]
        %v1605 = vld [vmem:[#allocation3 + $0x2] sm:$0x3]
        %v1606 = vld [vmem:[#allocation3 + $0x4] sm:$0x3]
        %v1607 = vld [vmem:[#allocation3 + $0x6] sm:$0x3]
        %v1608 = vld [vmem:[#allocation3 + $0x8] sm:$0x3]
        %v1609 = vld [vmem:[#allocation3 + $0xa] sm:$0x3]
        %v1610 = vld [vmem:[#allocation3 + $0xc] sm:$0x3]
        %v1611 = vld [vmem:[#allocation3 + $0xe] sm:$0x3]
        %v1612 = vsel %vm1596, 1, 0
        %v1613 = vsel %vm1597, 1, 0
        %v1614 = vsel %vm1598, 1, 0
        %v1615 = vsel %vm1599, 1, 0
        %v1616 = vsel %vm1600, 1, 0
        %v1617 = vsel %vm1601, 1, 0
        %v1618 = vsel %vm1602, 1, 0
        %v1619 = vsel %vm1603, 1, 0
        %1620 = vset.pattern.permute.xlu0 0
        %1621 = vperm.xlu0 %1620, %v1612
        %v1622 = vpop.permute.xlu0 %1621
        %1623 = vset.pattern.permute.xlu0 0
        %1624 = vperm.xlu0 %1623, %v1613
        %v1625 = vpop.permute.xlu0 %1624
        %1626 = vset.pattern.permute.xlu0 0
        %1627 = vperm.xlu0 %1626, %v1614
        %v1628 = vpop.permute.xlu0 %1627
        %1629 = vset.pattern.permute.xlu0 0
        %1630 = vperm.xlu0 %1629, %v1615
        %v1631 = vpop.permute.xlu0 %1630
        %1632 = vset.pattern.permute.xlu0 0
        %1633 = vperm.xlu0 %1632, %v1616
        %v1634 = vpop.permute.xlu0 %1633
        %1635 = vset.pattern.permute.xlu0 0
        %1636 = vperm.xlu0 %1635, %v1617
        %v1637 = vpop.permute.xlu0 %1636
        %1638 = vset.pattern.permute.xlu0 0
        %1639 = vperm.xlu0 %1638, %v1618
        %v1640 = vpop.permute.xlu0 %1639
        %1641 = vset.pattern.permute.xlu0 0
        %1642 = vperm.xlu0 %1641, %v1619
        %v1643 = vpop.permute.xlu0 %1642
        %vm1644 = vcmp.eq.s32.totalorder %v1622, 1
        %vm1645 = vcmp.eq.s32.totalorder %v1625, 1
        %vm1646 = vcmp.eq.s32.totalorder %v1628, 1
        %vm1647 = vcmp.eq.s32.totalorder %v1631, 1
        %vm1648 = vcmp.eq.s32.totalorder %v1634, 1
        %vm1649 = vcmp.eq.s32.totalorder %v1637, 1
        %vm1650 = vcmp.eq.s32.totalorder %v1640, 1
        %vm1651 = vcmp.eq.s32.totalorder %v1643, 1
        %v1652 = vsel %vm1644, %v1604, 0.0
        %v1653 = vsel %vm1645, %v1605, 0.0
        %v1654 = vsel %vm1646, %v1606, 0.0
        %v1655 = vsel %vm1647, %v1607, 0.0
        %v1656 = vsel %vm1648, %v1608, 0.0
        %v1657 = vsel %vm1649, %v1609, 0.0
        %v1658 = vsel %vm1650, %v1610, 0.0
        %v1659 = vsel %vm1651, %v1611, 0.0
        %v1660 = vcombine.low %v1652, %v1654
        %v1662 = vunpack.c.l.s4 1983009808
        %v1663 = vunpack.c.0.s8 %v1662
        %v1664 = vlaneseq
        %v1665 = vshrl.u32 %v1664, 7
        %v1666 = vsub.s32 %v1663, %v1665
        %v1667 = vrot.slane %v1660, %v1666
        %v1668 = vcombine.low %v1653, %v1655
        %v1670 = vunpack.c.l.s4 1983009808
        %v1671 = vunpack.c.0.s8 %v1670
        %v1672 = vlaneseq
        %v1673 = vshrl.u32 %v1672, 7
        %v1674 = vsub.s32 %v1671, %v1673
        %v1675 = vrot.slane %v1668, %v1674
        %v1676 = vcombine.low %v1656, %v1658
        %v1678 = vunpack.c.l.s4 1983009808
        %v1679 = vunpack.c.0.s8 %v1678
        %v1680 = vlaneseq
        %v1681 = vshrl.u32 %v1680, 7
        %v1682 = vsub.s32 %v1679, %v1681
        %v1683 = vrot.slane %v1676, %v1682
        %v1684 = vcombine.low %v1657, %v1659
        %v1686 = vunpack.c.l.s4 1983009808
        %v1687 = vunpack.c.0.s8 %v1686
        %v1688 = vlaneseq
        %v1689 = vshrl.u32 %v1688, 7
        %v1690 = vsub.s32 %v1687, %v1689
        %v1691 = vrot.slane %v1684, %v1690
        %v1692 = vcombine.low %v1667, %v1675
        %v1694 = vunpack.c.l.s4 1934713408
        %v1695 = vunpack.c.0.s8 %v1694
        %v1696 = vlaneseq
        %v1697 = vshrl.u32 %v1696, 7
        %v1698 = vsub.s32 %v1695, %v1697
        %v1699 = vrot.slane %v1692, %v1698
        %v1700 = vcombine.low %v1683, %v1691
        %v1702 = vunpack.c.l.s4 1934713408
        %v1703 = vunpack.c.0.s8 %v1702
        %v1704 = vlaneseq
        %v1705 = vshrl.u32 %v1704, 7
        %v1706 = vsub.s32 %v1703, %v1705
        %v1707 = vrot.slane %v1700, %v1706
        %v1708 = vcombine.low %v1699, %v1707
        %v1709 = vcombine.high %v1699, %v1707
        %1710 = vst.msk [vmem:[%s358] sm:$0xff] %vm499, %v1708
        %1711 = vst.msk [vmem:[%s358 + $0x8] sm:$0xff] %vm499, %v1709
        %s1712 = sand.u32 %s166, 1
        %s1713 = scalar_lea.sflag [#allocation8], %s1712
        %s1714 = sand.u32 %s166, 1
        %s1715 = smul.addr %s1714, 16
        %s1716 = scalar_lea.vmem [#allocation12], %s1715
        // Predicated region
        $region57: #{tpu_custom_call.1} parent=39 // pred_check
          %p1717 = pneg %p176
        $region58: #{tpu_custom_call.1} parent=39 // pred_check_branch
          %1719 = sbr.rel (%p1717) target = $region60
        $region59: #{tpu_custom_call.1} parent=39 // pred_region
          %s1720 = smul.u32 2, %s31
          %s1722 = ssub.s32 256, 256
          %1723 = vsyncadd %s1713, %s1722
          %s1724 = smul.addr %s1720, 2
          %s1725 = sadd.s32 %s32, %s1724
          %s1726 = smul.addr %s1725, 128
          %s1727 = scalar_lea.hbm %s5, %s1726
          %s1728 = sshll.u32 %s1716, 4
          %s1729 = int_to_ptr.vmem [resolvable:$true] %s1728
          %1734 = dma.vmem_to_hbm [thread:$0]  %s1729, 256, %s1727, %s1713, 128, 256, 8
        $region60: #{tpu_custom_call.1} parent=39 // pred_fallthru
          _
        // Predicated region
        $region61: #{tpu_custom_call.1} parent=39 // pred_check
          %p1735 = pneg %p202
        $region62: #{tpu_custom_call.1} parent=39 // pred_check_branch
          %1737 = sbr.rel (%p1735) target = $region64
        $region63: #{tpu_custom_call.1} parent=39 // pred_region
          %s1739 = ssub.s32 32, 32
          %1740 = vsyncadd [#allocation14], %s1739
          %s1741 = smul.addr %s31, 32
          %s1742 = scalar_lea.hbm %s6, %s1741
          %s1744 = sshll.u32 [#allocation13], 4
          %s1745 = int_to_ptr.vmem [resolvable:$true] %s1744
          %1747 = dma.vmem_to_hbm [thread:$0]  %s1745, 32, %s1742, [#allocation14]
        $region64: #{tpu_custom_call.1} parent=39 // pred_fallthru
          _
        // Predicated region
        $region65: #{tpu_custom_call.1} parent=39 // pred_check
          %p1748 = pneg %p228
        $region66: #{tpu_custom_call.1} parent=39 // pred_check_branch
          %1750 = sbr.rel (%p1748) target = $region68
        $region67: #{tpu_custom_call.1} parent=39 // pred_region
          %s1752 = ssub.s32 32, 32
          %1753 = vsyncadd [#allocation14], %s1752
          %s1754 = smul.addr %s31, 32
          %s1755 = scalar_lea.hbm %s7, %s1754
          %s1757 = sshll.u32 [#allocation15], 4
          %s1758 = int_to_ptr.vmem [resolvable:$true] %s1757
          %1760 = dma.vmem_to_hbm [thread:$0]  %s1758, 32, %s1755, [#allocation14]
        $region68: #{tpu_custom_call.1} parent=39 // pred_fallthru
          _
        // Predicated region
        $region69: #{tpu_custom_call.1} parent=39 // pred_check
          %p1761 = pneg %p202
        $region70: #{tpu_custom_call.1} parent=39 // pred_check_branch
          %1763 = sbr.rel (%p1761) target = $region72
        $region71: #{tpu_custom_call.1} parent=39 // pred_region
          %1764 = dma.done [#allocation14], 32
        $region72: #{tpu_custom_call.1} parent=39 // pred_fallthru
          _
        // Predicated region
        $region73: #{tpu_custom_call.1} parent=39 // pred_check
          %p1765 = pneg %p228
        $region74: #{tpu_custom_call.1} parent=39 // pred_check_branch
          %1767 = sbr.rel (%p1765) target = $region76
        $region75: #{tpu_custom_call.1} parent=39 // pred_region
          %1768 = dma.done [#allocation14], 32
        $region76: #{tpu_custom_call.1} parent=39 // pred_fallthru
          _
      $region40: #{tpu_custom_call.1} parent=5 // pred_fallthru
        _
      %p1769 = scmp.le.s32.totalorder 2, %s22
      // Predicated region
      $region77: #{tpu_custom_call.1} parent=5 // pred_check
        %p1770 = pneg %p1769
      $region78: #{tpu_custom_call.1} parent=5 // pred_check_branch
        %1772 = sbr.rel (%p1770) target = $region80
      $region79: #{tpu_custom_call.1} parent=5 // pred_region
        %s1773 = ssub.s32 %s22, 2
        // Predicated region
        $region81: #{tpu_custom_call.1} parent=79 // pred_check
          %p1774 = pneg %p182
        $region82: #{tpu_custom_call.1} parent=79 // pred_check_branch
          %1776 = sbr.rel (%p1774) target = $region84
        $region83: #{tpu_custom_call.1} parent=79 // pred_region
          %s1777 = sand.u32 %s167, 1
          %s1778 = scalar_lea.sflag [#allocation8], %s1777
          %s1779 = sand.u32 %s167, 1
          %s1780 = smul.addr %s1779, 16
          %s1781 = scalar_lea.vmem [#allocation12], %s1780
          %1782 = dma.done %s1778, 256
        $region84: #{tpu_custom_call.1} parent=79 // pred_fallthru
          _
      $region80: #{tpu_custom_call.1} parent=5 // pred_fallthru
        _
    $region6: #{tpu_custom_call.1} parent=1 // loop_footer
      %s26 = sadd.s32 1, %s22
    $region7: #{tpu_custom_call.1} parent=1 // loop_footer_branch
      %21 = sbr.rel target = $region3
    $region8: #{tpu_custom_call.1} parent=1 // loop_exit
      _
    %1783 = vsyncpa [#allocation7], 1
    %s1784 = scalar_lea.sflag [#allocation7], 1
    %1785 = vsyncpa %s1784, 1
    %1786 = vsyncpa [#allocation10], 1
    %1787 = vsyncpa [#allocation8], 1
    %s1788 = scalar_lea.sflag [#allocation8], 1
    %1789 = vsyncpa %s1788, 1
    %1790 = vsyncpa [#allocation14], 1

</llo_original>
